<compile_context>
chip_gen: v7x
topology: tpu7x:2x2x1
jax: 0.10.0
libtpu: 0.0.40
codegen_flags: <defaults>
</compile_context>

<pallas_src>
import functools

import jax
import jax.numpy as jnp
from jax.experimental import pallas as pl
from jax.experimental.pallas import tpu as pltpu


def _sigmoid(x):
    # explicit form (EUP exp) — avoids relying on lax.logistic lowering
    return 1.0 / (1.0 + jnp.exp(-x))


def _me3_kernel(x_ref, h0_ref, c0_ref,
                wgh_ref, wgx_ref, wgc_ref, bg_ref,
                wi_ref, wh_ref, bih_ref, wo_ref, bo_ref,
                o_ref, hout_ref, cout_ref,
                h_s, c_s,
                *, num_experts, hidden_size):
    t = pl.program_id(0)

    # ---- init carried state on the first timestep --------------------------
    @pl.when(t == 0)
    def _():
        h_s[...] = h0_ref[0].astype(jnp.float32)
        c_s[...] = c0_ref[0].astype(jnp.float32)

    x_t = x_ref[0].astype(jnp.float32)          # (bs, D)
    h = h_s[...]                                # (bs, H) recurrent state (f32)
    c = c_s[...]

    # ---- per-timestep adaptive gate: softmax(Linear([h, x, c])) -----------
    # Gate weight was split by input chunk in the wrapper: no in-kernel concat
    # or lane-offset slicing; each operand feeds the MXU directly.
    logits = (jnp.dot(h,   wgh_ref[0], preferred_element_type=jnp.float32)
              + jnp.dot(x_t, wgx_ref[0], preferred_element_type=jnp.float32)
              + jnp.dot(c,   wgc_ref[0], preferred_element_type=jnp.float32)
              + bg_ref[0])                       # (bs, k)
    m = jnp.max(logits, axis=-1, keepdims=True)
    e = jnp.exp(logits - m)
    coef = e / jnp.sum(e, axis=-1, keepdims=True)   # (bs, k)

    # ---- mixture-of-experts LSTM pre-activations ---------------------------
    # gates = sum_e coef[:,e] * (x @ WiT_e + h @ WhT_e + (bi_e + bh_e))
    gates = None
    for ei in range(num_experts):                # static unroll, k is tiny
        ge = (jnp.dot(x_t, wi_ref[ei], preferred_element_type=jnp.float32)
              + jnp.dot(h,   wh_ref[ei], preferred_element_type=jnp.float32)
              + bih_ref[ei])                     # (bs, 4H) — 4H == 128 lanes
        term = coef[:, ei:ei + 1] * ge
        gates = term if gates is None else gates + term

    H = hidden_size
    # sub-vreg gate chunks (tiny, within one 128-lane register)
    i_g = _sigmoid(gates[:, 0:H])
    f_g = _sigmoid(gates[:, H:2 * H])
    g_g = jnp.tanh(gates[:, 2 * H:3 * H])
    o_g = _sigmoid(gates[:, 3 * H:4 * H])

    c_new = f_g * c + i_g * g_g
    h_new = o_g * jnp.tanh(c_new)
    h_s[...] = h_new
    c_s[...] = c_new

    # ---- mixture-of-experts output projection (lane-dense, zero padded) ----
    out = None
    for ei in range(num_experts):
        oe = jnp.dot(h_new, wo_ref[ei], preferred_element_type=jnp.float32) + bo_ref[ei]
        term = coef[:, ei:ei + 1] * oe
        out = term if out is None else out + term
    o_ref[0] = out.astype(o_ref.dtype)           # full 128-lane store, no mask

    # ---- finalize: write the hidden state only once, at the last step ------
    @pl.when(t == pl.num_programs(0) - 1)
    def _():
        hout_ref[0] = h_new.astype(hout_ref.dtype)
        cout_ref[0] = c_new.astype(cout_ref.dtype)


def example_me3_forward(x, h0, c0, Wg, bg, Wi, bi, Wh, bh, Wo, bo):
    """Pallas implementation of ExampleME3.forward.

    x  : (T, bs, D)          h0, c0 : (1, bs, H)
    Wg : (T, k, 2H+D), bg: (T, k)            -- per-timestep AdaptiveLSTMGate
    Wi : (k, 4H, D),  bi: (k, 4H)            -- shared expert input weights
    Wh : (k, 4H, H),  bh: (k, 4H)            -- shared expert hidden weights
    Wo : (k, C, H),   bo: (k, C)             -- shared expert h2o weights
    Returns (o (T, bs, C), (h (1,bs,H), c (1,bs,H))).
    """
    T, bs, D = x.shape
    k, fourH, _ = Wi.shape
    H = fourH // 4
    C = Wo.shape[1]
    LANE = 128
    C_pad = max(LANE, ((C + LANE - 1) // LANE) * LANE)

    # ---- wrapper-side layout prep (keeps every kernel operand lane aligned) ---
    WgT = jnp.transpose(Wg, (0, 2, 1))                 # (T, G, k)
    Wg_h = WgT[:, 0:H, :]                              # gate chunk acting on h
    Wg_x = WgT[:, H:H + D, :]                          # gate chunk acting on x
    Wg_c = WgT[:, H + D:H + D + H, :]                  # gate chunk acting on c
    bg2 = bg[:, None, :]                               # (T, 1, k)

    WiT = jnp.transpose(Wi, (0, 2, 1))                 # (k, D, 4H)
    WhT = jnp.transpose(Wh, (0, 2, 1))                 # (k, H, 4H)
    b_gate = (bi + bh)[:, None, :]                     # (k, 1, 4H)

    WoT = jnp.transpose(Wo, (0, 2, 1))                 # (k, H, C)
    WoT = jnp.pad(WoT, ((0, 0), (0, 0), (0, C_pad - C)))   # lane-dense output
    bo_p = jnp.pad(bo, ((0, 0), (0, C_pad - C)))[:, None, :]

    kernel = functools.partial(_me3_kernel, num_experts=k, hidden_size=H)

    fixed3 = lambda t: (0, 0, 0)
    per_t = lambda t: (t, 0, 0)

    o_pad, h_out, c_out = pl.pallas_call(
        kernel,
        out_shape=(
            jax.ShapeDtypeStruct((T, bs, C_pad), x.dtype),
            jax.ShapeDtypeStruct((1, bs, H), x.dtype),
            jax.ShapeDtypeStruct((1, bs, H), x.dtype),
        ),
        grid_spec=pltpu.PrefetchScalarGridSpec(
            num_scalar_prefetch=0,
            grid=(T,),
            in_specs=[
                pl.BlockSpec((1, bs, D), per_t),        # x_t
                pl.BlockSpec((1, bs, H), fixed3),       # h0
                pl.BlockSpec((1, bs, H), fixed3),       # c0
                pl.BlockSpec((1, H, k), per_t),         # gate W, h chunk (per step)
                pl.BlockSpec((1, D, k), per_t),         # gate W, x chunk
                pl.BlockSpec((1, H, k), per_t),         # gate W, c chunk
                pl.BlockSpec((1, 1, k), per_t),         # gate bias
                pl.BlockSpec((k, D, 4 * H), fixed3),    # Wi^T   (shared over time)
                pl.BlockSpec((k, H, 4 * H), fixed3),    # Wh^T
                pl.BlockSpec((k, 1, 4 * H), fixed3),    # bi + bh
                pl.BlockSpec((k, H, C_pad), fixed3),    # Wo^T   (zero padded)
                pl.BlockSpec((k, 1, C_pad), fixed3),    # bo     (zero padded)
            ],
            out_specs=[
                pl.BlockSpec((1, bs, C_pad), per_t),    # per-step output (lane dense)
                pl.BlockSpec((1, bs, H), fixed3),       # final h
                pl.BlockSpec((1, bs, H), fixed3),       # final c
            ],
            scratch_shapes=[
                pltpu.VMEM((bs, H), jnp.float32),       # carried h
                pltpu.VMEM((bs, H), jnp.float32),       # carried c
            ],
        ),
        compiler_params=pltpu.CompilerParams(
            dimension_semantics=("arbitrary",)),        # recurrent over time
    )(x, h0, c0, Wg_h, Wg_x, Wg_c, bg2, WiT, WhT, b_gate, WoT, bo_p)

    # TODO(synk): `input_lengths` is accepted by ExampleME3.forward but unused
    # in its reference implementation, so it is not modeled here.
    return o_pad[:, :, :C], (h_out, c_out)


def _reference(x, h0, c0, Wg, bg, Wi, bi, Wh, bh, Wo, bo):
    """Plain-JAX reference matching the PyTorch forward."""
    T, bs, D = x.shape
    k, fourH, _ = Wi.shape
    H = fourH // 4
    hp = jax.lax.Precision.HIGHEST
    h, c = h0[0], c0[0]
    outs = []
    for t in range(T):
        gate_in = jnp.concatenate([h, x[t], c], axis=1)
        logits = jnp.dot(gate_in, Wg[t].T, precision=hp) + bg[t]
        coef = jax.nn.softmax(logits, axis=1)
        gates = 0.0
        for e in range(k):
            ge = (jnp.dot(x[t], Wi[e].T, precision=hp) + bi[e]
                  + jnp.dot(h, Wh[e].T, precision=hp) + bh[e])
            gates = gates + coef[:, e:e + 1] * ge
        i_g = jax.nn.sigmoid(gates[:, 0:H])
        f_g = jax.nn.sigmoid(gates[:, H:2 * H])
        g_g = jnp.tanh(gates[:, 2 * H:3 * H])
        o_g = jax.nn.sigmoid(gates[:, 3 * H:])
        c = f_g * c + i_g * g_g
        h = o_g * jnp.tanh(c)
        out = 0.0
        for e in range(k):
            out = out + coef[:, e:e + 1] * (jnp.dot(h, Wo[e].T, precision=hp) + bo[e])
        outs.append(out)
    return jnp.stack(outs, 0), (h[None], c[None])


if __name__ == "__main__":
    key = jax.random.PRNGKey(0)
    keys = jax.random.split(key, 11)

    # small shapes implied by the module: seq=T experts gates, 1 LSTM layer
    T, bs = 4, 8                 # seq_len (== setKT T), batch
    D, H, C, K = 32, 32, 8, 2    # input_size, hidden_size, num_classes, k experts
    G = 2 * H + D                # gate input = [h | x | c]  (use_t=False)

    stdv = 1.0 / (H ** 0.5)
    u = lambda kk, shape: jax.random.uniform(kk, shape, jnp.float32, -stdv, stdv)

    x = jax.random.normal(keys[0], (T, bs, D), dtype=jnp.float32)
    h0 = jax.random.normal(keys[1], (1, bs, H), dtype=jnp.float32) * 0.1
    c0 = jax.random.normal(keys[2], (1, bs, H), dtype=jnp.float32) * 0.1

    Wg = jax.random.normal(keys[3], (T, K, G), dtype=jnp.float32) * 0.1  # per-step gate
    bg = jax.random.normal(keys[4], (T, K), dtype=jnp.float32) * 0.1
    Wi = u(keys[5], (K, 4 * H, D))    # expert input->gates (shared across time)
    bi = u(keys[6], (K, 4 * H))
    Wh = u(keys[7], (K, 4 * H, H))    # expert hidden->gates
    bh = u(keys[8], (K, 4 * H))
    Wo = u(keys[9], (K, C, H))        # expert h2o
    bo = u(keys[10], (K, C))

    o, (h_n, c_n) = example_me3_forward(x, h0, c0, Wg, bg, Wi, bi, Wh, bh, Wo, bo)
    o = jax.block_until_ready(o)

    o_ref, (h_ref, c_ref) = _reference(x, h0, c0, Wg, bg, Wi, bi, Wh, bh, Wo, bo)

    assert o.shape == (T, bs, C)
    assert h_n.shape == (1, bs, H) and c_n.shape == (1, bs, H)
    assert jnp.allclose(o, o_ref, atol=1e-4, rtol=1e-4)
    assert jnp.allclose(h_n, h_ref, atol=1e-4, rtol=1e-4)
    assert jnp.allclose(c_n, c_ref, atol=1e-4, rtol=1e-4)

    print("KERNEL_OK")
</pallas_src>

<mosaic_0001>
module attributes {stable_mosaic.version = 11 : i64} {
  func.func @_me3_kernel(%arg0: i32, %arg1: memref<1x8x32xf32, #tpu.memory_space<vmem>>, %arg2: memref<1x8x32xf32, #tpu.memory_space<vmem>>, %arg3: memref<1x8x32xf32, #tpu.memory_space<vmem>>, %arg4: memref<1x32x2xf32, #tpu.memory_space<vmem>>, %arg5: memref<1x32x2xf32, #tpu.memory_space<vmem>>, %arg6: memref<1x32x2xf32, #tpu.memory_space<vmem>>, %arg7: memref<1x1x2xf32, #tpu.memory_space<vmem>>, %arg8: memref<2x32x128xf32, #tpu.memory_space<vmem>>, %arg9: memref<2x32x128xf32, #tpu.memory_space<vmem>>, %arg10: memref<2x1x128xf32, #tpu.memory_space<vmem>>, %arg11: memref<2x32x128xf32, #tpu.memory_space<vmem>>, %arg12: memref<2x1x128xf32, #tpu.memory_space<vmem>>, %arg13: memref<1x8x128xf32, #tpu.memory_space<vmem>>, %arg14: memref<1x8x32xf32, #tpu.memory_space<vmem>>, %arg15: memref<1x8x32xf32, #tpu.memory_space<vmem>>, %arg16: memref<8x32xf32, #tpu.memory_space<vmem>>, %arg17: memref<8x32xf32, #tpu.memory_space<vmem>>) attributes {dimension_semantics = [#tpu.dimension_semantics<arbitrary>], iteration_bounds = array<i64: 4>, scalar_prefetch = 0 : i64, scratch_operands = 2 : i64, tpu.core_type = #tpu.core_type<tc>, window_params = [{transform_indices = @transform_0, window_bounds = array<i64: 1, 8, 32>}, {pipeline_mode = #tpu.pipeline_mode<synchronous>, transform_indices = @transform_1, window_bounds = array<i64: 1, 8, 32>}, {pipeline_mode = #tpu.pipeline_mode<synchronous>, transform_indices = @transform_2, window_bounds = array<i64: 1, 8, 32>}, {transform_indices = @transform_3, window_bounds = array<i64: 1, 32, 2>}, {transform_indices = @transform_4, window_bounds = array<i64: 1, 32, 2>}, {transform_indices = @transform_5, window_bounds = array<i64: 1, 32, 2>}, {transform_indices = @transform_6, window_bounds = array<i64: 1, 1, 2>}, {pipeline_mode = #tpu.pipeline_mode<synchronous>, transform_indices = @transform_7, window_bounds = array<i64: 2, 32, 128>}, {pipeline_mode = #tpu.pipeline_mode<synchronous>, transform_indices = @transform_8, window_bounds = array<i64: 2, 32, 128>}, {pipeline_mode = #tpu.pipeline_mode<synchronous>, transform_indices = @transform_9, window_bounds = array<i64: 2, 1, 128>}, {pipeline_mode = #tpu.pipeline_mode<synchronous>, transform_indices = @transform_10, window_bounds = array<i64: 2, 32, 128>}, {pipeline_mode = #tpu.pipeline_mode<synchronous>, transform_indices = @transform_11, window_bounds = array<i64: 2, 1, 128>}, {transform_indices = @transform_12, window_bounds = array<i64: 1, 8, 128>}, {pipeline_mode = #tpu.pipeline_mode<synchronous>, transform_indices = @transform_13, window_bounds = array<i64: 1, 8, 32>}, {pipeline_mode = #tpu.pipeline_mode<synchronous>, transform_indices = @transform_14, window_bounds = array<i64: 1, 8, 32>}]} {
    %c0_i32 = arith.constant 0 : i32
    %0 = arith.cmpi eq, %arg0, %c0_i32 : i32
    %1 = arith.extui %0 : i1 to i32
    %c0_i32_0 = arith.constant 0 : i32
    %2 = arith.cmpi ne, %1, %c0_i32_0 : i32
    scf.if %2 {
      %c0_75 = arith.constant 0 : index
      %c0_76 = arith.constant 0 : index
      %c0_77 = arith.constant 0 : index
      %120 = vector.load %arg2[%c0_75, %c0_76, %c0_77] : memref<1x8x32xf32, #tpu.memory_space<vmem>>, vector<1x8x32xf32>
      %121 = vector.shape_cast %120 : vector<1x8x32xf32> to vector<8x32xf32>
      %c0_78 = arith.constant 0 : index
      %c0_79 = arith.constant 0 : index
      %122 = vector.load %arg16[%c0_78, %c0_79] : memref<8x32xf32, #tpu.memory_space<vmem>>, vector<8x32xf32>
      tpu.vector_store %arg16[%c0_78, %c0_79], %121 {strides = array<i32>} : memref<8x32xf32, #tpu.memory_space<vmem>>, vector<8x32xf32>,
      %c0_80 = arith.constant 0 : index
      %c0_81 = arith.constant 0 : index
      %c0_82 = arith.constant 0 : index
      %123 = vector.load %arg3[%c0_80, %c0_81, %c0_82] : memref<1x8x32xf32, #tpu.memory_space<vmem>>, vector<1x8x32xf32>
      %124 = vector.shape_cast %123 : vector<1x8x32xf32> to vector<8x32xf32>
      %c0_83 = arith.constant 0 : index
      %c0_84 = arith.constant 0 : index
      %125 = vector.load %arg17[%c0_83, %c0_84] : memref<8x32xf32, #tpu.memory_space<vmem>>, vector<8x32xf32>
      tpu.vector_store %arg17[%c0_83, %c0_84], %124 {strides = array<i32>} : memref<8x32xf32, #tpu.memory_space<vmem>>, vector<8x32xf32>,
    } else {
    }
    %c0 = arith.constant 0 : index
    %c0_1 = arith.constant 0 : index
    %c0_2 = arith.constant 0 : index
    %3 = vector.load %arg1[%c0, %c0_1, %c0_2] : memref<1x8x32xf32, #tpu.memory_space<vmem>>, vector<1x8x32xf32>
    %4 = vector.shape_cast %3 : vector<1x8x32xf32> to vector<8x32xf32>
    %c0_3 = arith.constant 0 : index
    %c0_4 = arith.constant 0 : index
    %5 = vector.load %arg16[%c0_3, %c0_4] : memref<8x32xf32, #tpu.memory_space<vmem>>, vector<8x32xf32>
    %c0_5 = arith.constant 0 : index
    %c0_6 = arith.constant 0 : index
    %6 = vector.load %arg17[%c0_5, %c0_6] : memref<8x32xf32, #tpu.memory_space<vmem>>, vector<8x32xf32>
    %c0_7 = arith.constant 0 : index
    %c0_8 = arith.constant 0 : index
    %c0_9 = arith.constant 0 : index
    %7 = vector.load %arg4[%c0_7, %c0_8, %c0_9] : memref<1x32x2xf32, #tpu.memory_space<vmem>>, vector<1x32x2xf32>
    %8 = vector.shape_cast %7 : vector<1x32x2xf32> to vector<32x2xf32>
    %cst = arith.constant dense<0.000000e+00> : vector<8x2xf32>
    %9 = tpu.matmul %5, %8, %cst {dimension_numbers = #tpu.dot_dimension_numbers<[1], [0], [0], [1], [0, 0, 1, 1], [], []>} : vector<8x32xf32>, vector<32x2xf32>, vector<8x2xf32> -> vector<8x2xf32>
    %c0_10 = arith.constant 0 : index
    %c0_11 = arith.constant 0 : index
    %c0_12 = arith.constant 0 : index
    %10 = vector.load %arg5[%c0_10, %c0_11, %c0_12] : memref<1x32x2xf32, #tpu.memory_space<vmem>>, vector<1x32x2xf32>
    %11 = vector.shape_cast %10 : vector<1x32x2xf32> to vector<32x2xf32>
    %cst_13 = arith.constant dense<0.000000e+00> : vector<8x2xf32>
    %12 = tpu.matmul %4, %11, %cst_13 {dimension_numbers = #tpu.dot_dimension_numbers<[1], [0], [0], [1], [0, 0, 1, 1], [], []>} : vector<8x32xf32>, vector<32x2xf32>, vector<8x2xf32> -> vector<8x2xf32>
    %13 = arith.addf %9, %12 : vector<8x2xf32>
    %c0_14 = arith.constant 0 : index
    %c0_15 = arith.constant 0 : index
    %c0_16 = arith.constant 0 : index
    %14 = vector.load %arg6[%c0_14, %c0_15, %c0_16] : memref<1x32x2xf32, #tpu.memory_space<vmem>>, vector<1x32x2xf32>
    %15 = vector.shape_cast %14 : vector<1x32x2xf32> to vector<32x2xf32>
    %cst_17 = arith.constant dense<0.000000e+00> : vector<8x2xf32>
    %16 = tpu.matmul %6, %15, %cst_17 {dimension_numbers = #tpu.dot_dimension_numbers<[1], [0], [0], [1], [0, 0, 1, 1], [], []>} : vector<8x32xf32>, vector<32x2xf32>, vector<8x2xf32> -> vector<8x2xf32>
    %17 = arith.addf %13, %16 : vector<8x2xf32>
    %c0_18 = arith.constant 0 : index
    %c0_19 = arith.constant 0 : index
    %c0_20 = arith.constant 0 : index
    %18 = vector.load %arg7[%c0_18, %c0_19, %c0_20] : memref<1x1x2xf32, #tpu.memory_space<vmem>>, vector<1x1x2xf32>
    %19 = vector.shape_cast %18 : vector<1x1x2xf32> to vector<1x2xf32>
    %20 = vector.broadcast %19 : vector<1x2xf32> to vector<8x2xf32>
    %21 = arith.addf %17, %20 : vector<8x2xf32>
    %cst_21 = arith.constant dense<0xFF800000> : vector<8xf32>
    %22 = vector.multi_reduction <maximumf>, %21, %cst_21 [1] : vector<8x2xf32> to vector<8xf32>
    %23 = vector.shape_cast %22 : vector<8xf32> to vector<8x1xf32>
    %24 = vector.broadcast %23 : vector<8x1xf32> to vector<8x2xf32>
    %25 = arith.subf %21, %24 : vector<8x2xf32>
    %26 = math.exp %25 : vector<8x2xf32>
    %cst_22 = arith.constant dense<0.000000e+00> : vector<8xf32>
    %27 = vector.multi_reduction <add>, %26, %cst_22 [1] : vector<8x2xf32> to vector<8xf32>
    %28 = vector.shape_cast %27 : vector<8xf32> to vector<8x1xf32>
    %29 = vector.broadcast %28 : vector<8x1xf32> to vector<8x2xf32>
    %30 = arith.divf %26, %29 : vector<8x2xf32>
    %c0_23 = arith.constant 0 : index
    %c0_24 = arith.constant 0 : index
    %c0_25 = arith.constant 0 : index
    %31 = vector.load %arg8[%c0_23, %c0_24, %c0_25] : memref<2x32x128xf32, #tpu.memory_space<vmem>>, vector<1x32x128xf32>
    %32 = vector.shape_cast %31 : vector<1x32x128xf32> to vector<32x128xf32>
    %cst_26 = arith.constant dense<0.000000e+00> : vector<8x128xf32>
    %33 = tpu.matmul %4, %32, %cst_26 {dimension_numbers = #tpu.dot_dimension_numbers<[1], [0], [0], [1], [0, 0, 1, 1], [], []>} : vector<8x32xf32>, vector<32x128xf32>, vector<8x128xf32> -> vector<8x128xf32>
    %c0_27 = arith.constant 0 : index
    %c0_28 = arith.constant 0 : index
    %c0_29 = arith.constant 0 : index
    %34 = vector.load %arg9[%c0_27, %c0_28, %c0_29] : memref<2x32x128xf32, #tpu.memory_space<vmem>>, vector<1x32x128xf32>
    %35 = vector.shape_cast %34 : vector<1x32x128xf32> to vector<32x128xf32>
    %cst_30 = arith.constant dense<0.000000e+00> : vector<8x128xf32>
    %36 = tpu.matmul %5, %35, %cst_30 {dimension_numbers = #tpu.dot_dimension_numbers<[1], [0], [0], [1], [0, 0, 1, 1], [], []>} : vector<8x32xf32>, vector<32x128xf32>, vector<8x128xf32> -> vector<8x128xf32>
    %37 = arith.addf %33, %36 : vector<8x128xf32>
    %c0_31 = arith.constant 0 : index
    %c0_32 = arith.constant 0 : index
    %c0_33 = arith.constant 0 : index
    %38 = vector.load %arg10[%c0_31, %c0_32, %c0_33] : memref<2x1x128xf32, #tpu.memory_space<vmem>>, vector<1x1x128xf32>
    %39 = vector.shape_cast %38 : vector<1x1x128xf32> to vector<1x128xf32>
    %40 = vector.broadcast %39 : vector<1x128xf32> to vector<8x128xf32>
    %41 = arith.addf %37, %40 : vector<8x128xf32>
    %42 = vector.extract_strided_slice %30 {offsets = [0, 0], sizes = [8, 1], strides = [1, 1]} : vector<8x2xf32> to vector<8x1xf32>
    %43 = vector.broadcast %42 : vector<8x1xf32> to vector<8x128xf32>
    %44 = arith.mulf %43, %41 : vector<8x128xf32>
    %c1 = arith.constant 1 : index
    %c0_34 = arith.constant 0 : index
    %c0_35 = arith.constant 0 : index
    %45 = vector.load %arg8[%c1, %c0_34, %c0_35] : memref<2x32x128xf32, #tpu.memory_space<vmem>>, vector<1x32x128xf32>
    %46 = vector.shape_cast %45 : vector<1x32x128xf32> to vector<32x128xf32>
    %cst_36 = arith.constant dense<0.000000e+00> : vector<8x128xf32>
    %47 = tpu.matmul %4, %46, %cst_36 {dimension_numbers = #tpu.dot_dimension_numbers<[1], [0], [0], [1], [0, 0, 1, 1], [], []>} : vector<8x32xf32>, vector<32x128xf32>, vector<8x128xf32> -> vector<8x128xf32>
    %c1_37 = arith.constant 1 : index
    %c0_38 = arith.constant 0 : index
    %c0_39 = arith.constant 0 : index
    %48 = vector.load %arg9[%c1_37, %c0_38, %c0_39] : memref<2x32x128xf32, #tpu.memory_space<vmem>>, vector<1x32x128xf32>
    %49 = vector.shape_cast %48 : vector<1x32x128xf32> to vector<32x128xf32>
    %cst_40 = arith.constant dense<0.000000e+00> : vector<8x128xf32>
    %50 = tpu.matmul %5, %49, %cst_40 {dimension_numbers = #tpu.dot_dimension_numbers<[1], [0], [0], [1], [0, 0, 1, 1], [], []>} : vector<8x32xf32>, vector<32x128xf32>, vector<8x128xf32> -> vector<8x128xf32>
    %51 = arith.addf %47, %50 : vector<8x128xf32>
    %c1_41 = arith.constant 1 : index
    %c0_42 = arith.constant 0 : index
    %c0_43 = arith.constant 0 : index
    %52 = vector.load %arg10[%c1_41, %c0_42, %c0_43] : memref<2x1x128xf32, #tpu.memory_space<vmem>>, vector<1x1x128xf32>
    %53 = vector.shape_cast %52 : vector<1x1x128xf32> to vector<1x128xf32>
    %54 = vector.broadcast %53 : vector<1x128xf32> to vector<8x128xf32>
    %55 = arith.addf %51, %54 : vector<8x128xf32>
    %56 = vector.extract_strided_slice %30 {offsets = [0, 1], sizes = [8, 1], strides = [1, 1]} : vector<8x2xf32> to vector<8x1xf32>
    %57 = vector.broadcast %56 : vector<8x1xf32> to vector<8x128xf32>
    %58 = arith.mulf %57, %55 : vector<8x128xf32>
    %59 = arith.addf %44, %58 : vector<8x128xf32>
    %60 = vector.extract_strided_slice %59 {offsets = [0, 0], sizes = [8, 32], strides = [1, 1]} : vector<8x128xf32> to vector<8x32xf32>
    %cst_44 = arith.constant 0.000000e+00 : f32
    %61 = vector.broadcast %cst_44 : f32 to vector<8x32xf32>
    %62 = arith.subf %61, %60 : vector<8x32xf32>
    %63 = math.exp %62 : vector<8x32xf32>
    %cst_45 = arith.constant 1.000000e+00 : f32
    %64 = vector.broadcast %cst_45 : f32 to vector<8x32xf32>
    %65 = arith.addf %64, %63 : vector<8x32xf32>
    %cst_46 = arith.constant 1.000000e+00 : f32
    %66 = vector.broadcast %cst_46 : f32 to vector<8x32xf32>
    %67 = arith.divf %66, %65 : vector<8x32xf32>
    %68 = vector.extract_strided_slice %59 {offsets = [0, 32], sizes = [8, 32], strides = [1, 1]} : vector<8x128xf32> to vector<8x32xf32>
    %cst_47 = arith.constant 0.000000e+00 : f32
    %69 = vector.broadcast %cst_47 : f32 to vector<8x32xf32>
    %70 = arith.subf %69, %68 : vector<8x32xf32>
    %71 = math.exp %70 : vector<8x32xf32>
    %cst_48 = arith.constant 1.000000e+00 : f32
    %72 = vector.broadcast %cst_48 : f32 to vector<8x32xf32>
    %73 = arith.addf %72, %71 : vector<8x32xf32>
    %cst_49 = arith.constant 1.000000e+00 : f32
    %74 = vector.broadcast %cst_49 : f32 to vector<8x32xf32>
    %75 = arith.divf %74, %73 : vector<8x32xf32>
    %76 = vector.extract_strided_slice %59 {offsets = [0, 64], sizes = [8, 32], strides = [1, 1]} : vector<8x128xf32> to vector<8x32xf32>
    %77 = math.tanh %76 : vector<8x32xf32>
    %78 = vector.extract_strided_slice %59 {offsets = [0, 96], sizes = [8, 32], strides = [1, 1]} : vector<8x128xf32> to vector<8x32xf32>
    %cst_50 = arith.constant 0.000000e+00 : f32
    %79 = vector.broadcast %cst_50 : f32 to vector<8x32xf32>
    %80 = arith.subf %79, %78 : vector<8x32xf32>
    %81 = math.exp %80 : vector<8x32xf32>
    %cst_51 = arith.constant 1.000000e+00 : f32
    %82 = vector.broadcast %cst_51 : f32 to vector<8x32xf32>
    %83 = arith.addf %82, %81 : vector<8x32xf32>
    %cst_52 = arith.constant 1.000000e+00 : f32
    %84 = vector.broadcast %cst_52 : f32 to vector<8x32xf32>
    %85 = arith.divf %84, %83 : vector<8x32xf32>
    %86 = arith.mulf %75, %6 : vector<8x32xf32>
    %87 = arith.mulf %67, %77 : vector<8x32xf32>
    %88 = arith.addf %86, %87 : vector<8x32xf32>
    %89 = math.tanh %88 : vector<8x32xf32>
    %90 = arith.mulf %85, %89 : vector<8x32xf32>
    %c0_53 = arith.constant 0 : index
    %c0_54 = arith.constant 0 : index
    %91 = vector.load %arg16[%c0_53, %c0_54] : memref<8x32xf32, #tpu.memory_space<vmem>>, vector<8x32xf32>
    tpu.vector_store %arg16[%c0_53, %c0_54], %90 {strides = array<i32>} : memref<8x32xf32, #tpu.memory_space<vmem>>, vector<8x32xf32>,
    %c0_55 = arith.constant 0 : index
    %c0_56 = arith.constant 0 : index
    %92 = vector.load %arg17[%c0_55, %c0_56] : memref<8x32xf32, #tpu.memory_space<vmem>>, vector<8x32xf32>
    tpu.vector_store %arg17[%c0_55, %c0_56], %88 {strides = array<i32>} : memref<8x32xf32, #tpu.memory_space<vmem>>, vector<8x32xf32>,
    %c0_57 = arith.constant 0 : index
    %c0_58 = arith.constant 0 : index
    %c0_59 = arith.constant 0 : index
    %93 = vector.load %arg11[%c0_57, %c0_58, %c0_59] : memref<2x32x128xf32, #tpu.memory_space<vmem>>, vector<1x32x128xf32>
    %94 = vector.shape_cast %93 : vector<1x32x128xf32> to vector<32x128xf32>
    %cst_60 = arith.constant dense<0.000000e+00> : vector<8x128xf32>
    %95 = tpu.matmul %90, %94, %cst_60 {dimension_numbers = #tpu.dot_dimension_numbers<[1], [0], [0], [1], [0, 0, 1, 1], [], []>} : vector<8x32xf32>, vector<32x128xf32>, vector<8x128xf32> -> vector<8x128xf32>
    %c0_61 = arith.constant 0 : index
    %c0_62 = arith.constant 0 : index
    %c0_63 = arith.constant 0 : index
    %96 = vector.load %arg12[%c0_61, %c0_62, %c0_63] : memref<2x1x128xf32, #tpu.memory_space<vmem>>, vector<1x1x128xf32>
    %97 = vector.shape_cast %96 : vector<1x1x128xf32> to vector<1x128xf32>
    %98 = vector.broadcast %97 : vector<1x128xf32> to vector<8x128xf32>
    %99 = arith.addf %95, %98 : vector<8x128xf32>
    %100 = vector.extract_strided_slice %30 {offsets = [0, 0], sizes = [8, 1], strides = [1, 1]} : vector<8x2xf32> to vector<8x1xf32>
    %101 = vector.broadcast %100 : vector<8x1xf32> to vector<8x128xf32>
    %102 = arith.mulf %101, %99 : vector<8x128xf32>
    %c1_64 = arith.constant 1 : index
    %c0_65 = arith.constant 0 : index
    %c0_66 = arith.constant 0 : index
    %103 = vector.load %arg11[%c1_64, %c0_65, %c0_66] : memref<2x32x128xf32, #tpu.memory_space<vmem>>, vector<1x32x128xf32>
    %104 = vector.shape_cast %103 : vector<1x32x128xf32> to vector<32x128xf32>
    %cst_67 = arith.constant dense<0.000000e+00> : vector<8x128xf32>
    %105 = tpu.matmul %90, %104, %cst_67 {dimension_numbers = #tpu.dot_dimension_numbers<[1], [0], [0], [1], [0, 0, 1, 1], [], []>} : vector<8x32xf32>, vector<32x128xf32>, vector<8x128xf32> -> vector<8x128xf32>
    %c1_68 = arith.constant 1 : index
    %c0_69 = arith.constant 0 : index
    %c0_70 = arith.constant 0 : index
    %106 = vector.load %arg12[%c1_68, %c0_69, %c0_70] : memref<2x1x128xf32, #tpu.memory_space<vmem>>, vector<1x1x128xf32>
    %107 = vector.shape_cast %106 : vector<1x1x128xf32> to vector<1x128xf32>
    %108 = vector.broadcast %107 : vector<1x128xf32> to vector<8x128xf32>
    %109 = arith.addf %105, %108 : vector<8x128xf32>
    %110 = vector.extract_strided_slice %30 {offsets = [0, 1], sizes = [8, 1], strides = [1, 1]} : vector<8x2xf32> to vector<8x1xf32>
    %111 = vector.broadcast %110 : vector<8x1xf32> to vector<8x128xf32>
    %112 = arith.mulf %111, %109 : vector<8x128xf32>
    %113 = arith.addf %102, %112 : vector<8x128xf32>
    %c0_71 = arith.constant 0 : index
    %c0_72 = arith.constant 0 : index
    %c0_73 = arith.constant 0 : index
    %114 = vector.load %arg13[%c0_71, %c0_72, %c0_73] : memref<1x8x128xf32, #tpu.memory_space<vmem>>, vector<1x8x128xf32>
    %115 = vector.shape_cast %114 : vector<1x8x128xf32> to vector<8x128xf32>
    %116 = vector.shape_cast %113 : vector<8x128xf32> to vector<1x8x128xf32>
    tpu.vector_store %arg13[%c0_71, %c0_72, %c0_73], %116 {strides = array<i32>} : memref<1x8x128xf32, #tpu.memory_space<vmem>>, vector<1x8x128xf32>,
    %c3_i32 = arith.constant 3 : i32
    %117 = arith.cmpi eq, %arg0, %c3_i32 : i32
    %118 = arith.extui %117 : i1 to i32
    %c0_i32_74 = arith.constant 0 : i32
    %119 = arith.cmpi ne, %118, %c0_i32_74 : i32
    scf.if %119 {
      %c0_75 = arith.constant 0 : index
      %c0_76 = arith.constant 0 : index
      %c0_77 = arith.constant 0 : index
      %120 = vector.load %arg14[%c0_75, %c0_76, %c0_77] : memref<1x8x32xf32, #tpu.memory_space<vmem>>, vector<1x8x32xf32>
      %121 = vector.shape_cast %120 : vector<1x8x32xf32> to vector<8x32xf32>
      %122 = vector.shape_cast %90 : vector<8x32xf32> to vector<1x8x32xf32>
      tpu.vector_store %arg14[%c0_75, %c0_76, %c0_77], %122 {strides = array<i32>} : memref<1x8x32xf32, #tpu.memory_space<vmem>>, vector<1x8x32xf32>,
      %c0_78 = arith.constant 0 : index
      %c0_79 = arith.constant 0 : index
      %c0_80 = arith.constant 0 : index
      %123 = vector.load %arg15[%c0_78, %c0_79, %c0_80] : memref<1x8x32xf32, #tpu.memory_space<vmem>>, vector<1x8x32xf32>
      %124 = vector.shape_cast %123 : vector<1x8x32xf32> to vector<8x32xf32>
      %125 = vector.shape_cast %88 : vector<8x32xf32> to vector<1x8x32xf32>
      tpu.vector_store %arg15[%c0_78, %c0_79, %c0_80], %125 {strides = array<i32>} : memref<1x8x32xf32, #tpu.memory_space<vmem>>, vector<1x8x32xf32>,
    } else {
    }
    return
  }
  func.func @transform_0(%arg0: i32) -> (i32, i32, i32) {
    %c0_i32 = arith.constant 0 : i32
    %c0_i32_0 = arith.constant 0 : i32
    %c0_i32_1 = arith.constant 0 : i32
    return %arg0, %c0_i32, %c0_i32_0 : i32, i32, i32
  }
  func.func @transform_1(%arg0: i32) -> (i32, i32, i32) {
    %c0_i32 = arith.constant 0 : i32
    %c0_i32_0 = arith.constant 0 : i32
    %c0_i32_1 = arith.constant 0 : i32
    %c0_i32_2 = arith.constant 0 : i32
    return %c0_i32, %c0_i32_0, %c0_i32_1 : i32, i32, i32
  }
  func.func @transform_2(%arg0: i32) -> (i32, i32, i32) {
    %c0_i32 = arith.constant 0 : i32
    %c0_i32_0 = arith.constant 0 : i32
    %c0_i32_1 = arith.constant 0 : i32
    %c0_i32_2 = arith.constant 0 : i32
    return %c0_i32, %c0_i32_0, %c0_i32_1 : i32, i32, i32
  }
  func.func @transform_3(%arg0: i32) -> (i32, i32, i32) {
    %c0_i32 = arith.constant 0 : i32
    %c0_i32_0 = arith.constant 0 : i32
    %c0_i32_1 = arith.constant 0 : i32
    return %arg0, %c0_i32, %c0_i32_0 : i32, i32, i32
  }
  func.func @transform_4(%arg0: i32) -> (i32, i32, i32) {
    %c0_i32 = arith.constant 0 : i32
    %c0_i32_0 = arith.constant 0 : i32
    %c0_i32_1 = arith.constant 0 : i32
    return %arg0, %c0_i32, %c0_i32_0 : i32, i32, i32
  }
  func.func @transform_5(%arg0: i32) -> (i32, i32, i32) {
    %c0_i32 = arith.constant 0 : i32
    %c0_i32_0 = arith.constant 0 : i32
    %c0_i32_1 = arith.constant 0 : i32
    return %arg0, %c0_i32, %c0_i32_0 : i32, i32, i32
  }
  func.func @transform_6(%arg0: i32) -> (i32, i32, i32) {
    %c0_i32 = arith.constant 0 : i32
    %c0_i32_0 = arith.constant 0 : i32
    %c0_i32_1 = arith.constant 0 : i32
    return %arg0, %c0_i32, %c0_i32_0 : i32, i32, i32
  }
  func.func @transform_7(%arg0: i32) -> (i32, i32, i32) {
    %c0_i32 = arith.constant 0 : i32
    %c0_i32_0 = arith.constant 0 : i32
    %c0_i32_1 = arith.constant 0 : i32
    %c0_i32_2 = arith.constant 0 : i32
    return %c0_i32, %c0_i32_0, %c0_i32_1 : i32, i32, i32
  }
  func.func @transform_8(%arg0: i32) -> (i32, i32, i32) {
    %c0_i32 = arith.constant 0 : i32
    %c0_i32_0 = arith.constant 0 : i32
    %c0_i32_1 = arith.constant 0 : i32
    %c0_i32_2 = arith.constant 0 : i32
    return %c0_i32, %c0_i32_0, %c0_i32_1 : i32, i32, i32
  }
  func.func @transform_9(%arg0: i32) -> (i32, i32, i32) {
    %c0_i32 = arith.constant 0 : i32
    %c0_i32_0 = arith.constant 0 : i32
    %c0_i32_1 = arith.constant 0 : i32
    %c0_i32_2 = arith.constant 0 : i32
    return %c0_i32, %c0_i32_0, %c0_i32_1 : i32, i32, i32
  }
  func.func @transform_10(%arg0: i32) -> (i32, i32, i32) {
    %c0_i32 = arith.constant 0 : i32
    %c0_i32_0 = arith.constant 0 : i32
    %c0_i32_1 = arith.constant 0 : i32
    %c0_i32_2 = arith.constant 0 : i32
    return %c0_i32, %c0_i32_0, %c0_i32_1 : i32, i32, i32
  }
  func.func @transform_11(%arg0: i32) -> (i32, i32, i32) {
    %c0_i32 = arith.constant 0 : i32
    %c0_i32_0 = arith.constant 0 : i32
    %c0_i32_1 = arith.constant 0 : i32
    %c0_i32_2 = arith.constant 0 : i32
    return %c0_i32, %c0_i32_0, %c0_i32_1 : i32, i32, i32
  }
  func.func @transform_12(%arg0: i32) -> (i32, i32, i32) {
    %c0_i32 = arith.constant 0 : i32
    %c0_i32_0 = arith.constant 0 : i32
    %c0_i32_1 = arith.constant 0 : i32
    return %arg0, %c0_i32, %c0_i32_0 : i32, i32, i32
  }
  func.func @transform_13(%arg0: i32) -> (i32, i32, i32) {
    %c0_i32 = arith.constant 0 : i32
    %c0_i32_0 = arith.constant 0 : i32
    %c0_i32_1 = arith.constant 0 : i32
    %c0_i32_2 = arith.constant 0 : i32
    return %c0_i32, %c0_i32_0, %c0_i32_1 : i32, i32, i32
  }
  func.func @transform_14(%arg0: i32) -> (i32, i32, i32) {
    %c0_i32 = arith.constant 0 : i32
    %c0_i32_0 = arith.constant 0 : i32
    %c0_i32_1 = arith.constant 0 : i32
    %c0_i32_2 = arith.constant 0 : i32
    return %c0_i32, %c0_i32_0, %c0_i32_1 : i32, i32, i32
  }
}

</mosaic_0001>

<llo_original>
// kernel: tpu_custom_call.1
$region0: #{tpu_custom_call.1}
  #allocation0 [shape = 'u32[]', space=smem, size = 0x4, offset = 0x4, fixed_abs, tag = 'smem constant byte address 0x4 - core index']
  #allocation1 [shape = 'u32[144,128]{1,0:T(1,128)}', space=vmem, size = 0x12000, scoped, tag = 'internal scratch']
  #allocation2 [shape = 'f32[8,32]{1,0:T(8,128)}', space=vmem, size = 0x1000, scoped, tag = 'scratch operand']
  #allocation3 [shape = 'f32[8,32]{1,0:T(8,128)}', space=vmem, size = 0x1000, scoped, tag = 'scratch operand']
  %s0 = inlined_call_operand.vmem [shape: f32[4,8,32], index: 0, kind: input, shape index: {}]
  %s1 = inlined_call_operand.vmem [shape: f32[1,8,32], index: 1, kind: input, shape index: {}]
  %s2 = inlined_call_operand.vmem [shape: f32[1,8,32], index: 2, kind: input, shape index: {}]
  %s3 = inlined_call_operand.vmem [shape: f32[4,32,2], index: 3, kind: input, shape index: {}]
  %s4 = inlined_call_operand.vmem [shape: f32[4,32,2], index: 4, kind: input, shape index: {}]
  %s5 = inlined_call_operand.vmem [shape: f32[4,32,2], index: 5, kind: input, shape index: {}]
  %s6 = inlined_call_operand.vmem [shape: f32[4,1,2], index: 6, kind: input, shape index: {}]
  %s7 = inlined_call_operand.vmem [shape: f32[2,32,128], index: 7, kind: input, shape index: {}]
  %s8 = inlined_call_operand.vmem [shape: f32[2,32,128], index: 8, kind: input, shape index: {}]
  %s9 = inlined_call_operand.vmem [shape: f32[2,1,128], index: 9, kind: input, shape index: {}]
  %s10 = inlined_call_operand.vmem [shape: f32[2,32,128], index: 10, kind: input, shape index: {}]
  %s11 = inlined_call_operand.vmem [shape: f32[2,1,128], index: 11, kind: input, shape index: {}]
  %s12 = inlined_call_operand.hbm [shape: f32[4,8,128], index: 12, kind: output, shape index: {0}]
  %s13 = inlined_call_operand.hbm [shape: f32[1,8,32], index: 13, kind: output, shape index: {1}]
  %s14 = inlined_call_operand.hbm [shape: f32[1,8,32], index: 14, kind: output, shape index: {2}]
  %15 = xla_tuple %s12, %s13, %s14
  %s16 = sld [smem:[#allocation0]]
  $region105: #{tpu_custom_call.1} parent=0
    _
  %s18 = ssub.s32 1, %s16
  %s19 = scalar_select 0, %s18, %s16
  $region1: #{tpu_custom_call.1} parent=0
    #allocation4 [shape = 'u8[8192]{0}', space=vmem, size = 0x2000, scoped, tag = 'output window, operand 0']
    #allocation5 [shape = 's32[2]{0}', space=sflag, size = 0x8, scoped, tag = 'scoped memory for tpu_custom_call.1']
    #allocation6 [shape = 'u8[4096]{0}', space=vmem, size = 0x1000, scoped, tag = 'output window, operand 1, single buffered']
    #allocation7 [shape = 's32[1]{0}', space=sflag, size = 0x4, scoped, tag = 'scoped memory for tpu_custom_call.1']
    #allocation8 [shape = 'u8[4096]{0}', space=vmem, size = 0x1000, scoped, tag = 'output window, operand 2, single buffered']
    %20 = vsyncpa [#allocation5], 0
    %s21 = scalar_lea.sflag [#allocation5], 1
    %22 = vsyncpa %s21, 0
    %23 = vsyncpa [#allocation7], 0
    loop: start=0, step=1, limit=6
    $region2: #{tpu_custom_call.1} parent=1 // loop_pre_header
      _
    $region3: #{tpu_custom_call.1} parent=1 // loop_header
      %s25 = sphi 0, %s29
      %p26 = scmp.ge.s32.totalorder %s25, 6
      %s35 = sphi 0, %s37
      %s38 = sphi 0, %s35
      %s39 = sphi 0, %s38
      %s55 = sphi 0, %s39
      %s59 = sphi 0, %s59
      %s61 = sphi 0, %s59
      %s62 = sphi 0, %s61
      %s76 = sphi 0, %s62
      %s80 = sphi 0, %s80
      %s82 = sphi 0, %s80
      %s83 = sphi 0, %s82
      %s97 = sphi 0, %s83
      %s103 = sphi 0, %s105
      %s106 = sphi 0, %s103
      %s107 = sphi 0, %s106
      %s123 = sphi 0, %s107
      %s129 = sphi 0, %s131
      %s132 = sphi 0, %s129
      %s133 = sphi 0, %s132
      %s149 = sphi 0, %s133
      %s155 = sphi 0, %s157
      %s158 = sphi 0, %s155
      %s159 = sphi 0, %s158
      %s175 = sphi 0, %s159
      %s181 = sphi 0, %s183
      %s184 = sphi 0, %s181
      %s185 = sphi 0, %s184
      %s201 = sphi 0, %s185
      %s205 = sphi 0, %s205
      %s207 = sphi 0, %s205
      %s208 = sphi 0, %s207
      %s222 = sphi 0, %s208
      %s226 = sphi 0, %s226
      %s228 = sphi 0, %s226
      %s229 = sphi 0, %s228
      %s243 = sphi 0, %s229
      %s247 = sphi 0, %s247
      %s249 = sphi 0, %s247
      %s250 = sphi 0, %s249
      %s264 = sphi 0, %s250
      %s268 = sphi 0, %s268
      %s270 = sphi 0, %s268
      %s271 = sphi 0, %s270
      %s285 = sphi 0, %s271
      %s289 = sphi 0, %s289
      %s291 = sphi 0, %s289
      %s292 = sphi 0, %s291
      %s306 = sphi 0, %s292
      %s312 = sphi 0, %s314
      %s315 = sphi 0, %s312
      %s316 = sphi 0, %s315
      %s332 = sphi 0, %s316
      %s336 = sphi 0, %s336
      %s338 = sphi 0, %s336
      %s339 = sphi 0, %s338
      %s353 = sphi 0, %s339
      %s357 = sphi 0, %s357
      %s359 = sphi 0, %s357
      %s360 = sphi 0, %s359
      %s374 = sphi 0, %s360
    $region4: #{tpu_custom_call.1} parent=1 // loop_header_branch
      %28 = sbr.rel (%p26) target = $region8
    $region5: #{tpu_custom_call.1} parent=1 // loop_body
      %s30 = ssub.s32 %s25, 1
      %s31 = ssub.s32 %s25, 2
      %s32 = sadd.s32 %s25, 1
      %s33 = ssub.s32 %s25, %s32
      %p34 = scmp.eq.s32.totalorder %s33, 0
      %s36 = sadd.s32 %s35, 1
      %s37 = scalar_select %p34, %s35, %s36
      %p40 = pneg %p34
      %p41 = scmp.eq.s32.totalorder %s25, 3
      %p42 = por %p40, %p41
      %p43 = scmp.ne.s32.totalorder %s35, %s38
      %p44 = scmp.eq.s32.totalorder %s25, 0
      %p45 = por %p43, %p44
      %p46 = scmp.ne.s32.totalorder %s35, %s38
      %p47 = scmp.eq.s32.totalorder %s30, 3
      %p48 = por %p46, %p47
      %p49 = scmp.ne.s32.totalorder %s38, %s39
      %p50 = scmp.eq.s32.totalorder %s30, 0
      %p51 = por %p49, %p50
      %p52 = scmp.ne.s32.totalorder %s38, %s39
      %p53 = scmp.eq.s32.totalorder %s31, 3
      %p54 = por %p52, %p53
      %p56 = scmp.ne.s32.totalorder %s39, %s55
      %p57 = scmp.eq.s32.totalorder %s31, 0
      %p58 = por %p56, %p57
      %s60 = sadd.s32 %s59, 1
      %p63 = scmp.eq.s32.totalorder %s25, 3
      %p64 = scmp.ne.s32.totalorder %s59, %s61
      %p65 = scmp.eq.s32.totalorder %s25, 0
      %p66 = por %p64, %p65
      %p67 = scmp.ne.s32.totalorder %s59, %s61
      %p68 = scmp.eq.s32.totalorder %s30, 3
      %p69 = por %p67, %p68
      %p70 = scmp.ne.s32.totalorder %s61, %s62
      %p71 = scmp.eq.s32.totalorder %s30, 0
      %p72 = por %p70, %p71
      %p73 = scmp.ne.s32.totalorder %s61, %s62
      %p74 = scmp.eq.s32.totalorder %s31, 3
      %p75 = por %p73, %p74
      %p77 = scmp.ne.s32.totalorder %s62, %s76
      %p78 = scmp.eq.s32.totalorder %s31, 0
      %p79 = por %p77, %p78
      %s81 = sadd.s32 %s80, 1
      %p84 = scmp.eq.s32.totalorder %s25, 3
      %p85 = scmp.ne.s32.totalorder %s80, %s82
      %p86 = scmp.eq.s32.totalorder %s25, 0
      %p87 = por %p85, %p86
      %p88 = scmp.ne.s32.totalorder %s80, %s82
      %p89 = scmp.eq.s32.totalorder %s30, 3
      %p90 = por %p88, %p89
      %p91 = scmp.ne.s32.totalorder %s82, %s83
      %p92 = scmp.eq.s32.totalorder %s30, 0
      %p93 = por %p91, %p92
      %p94 = scmp.ne.s32.totalorder %s82, %s83
      %p95 = scmp.eq.s32.totalorder %s31, 3
      %p96 = por %p94, %p95
      %p98 = scmp.ne.s32.totalorder %s83, %s97
      %p99 = scmp.eq.s32.totalorder %s31, 0
      %p100 = por %p98, %p99
      %s101 = ssub.s32 %s25, %s32
      %p102 = scmp.eq.s32.totalorder %s101, 0
      %s104 = sadd.s32 %s103, 1
      %s105 = scalar_select %p102, %s103, %s104
      %p108 = pneg %p102
      %p109 = scmp.eq.s32.totalorder %s25, 3
      %p110 = por %p108, %p109
      %p111 = scmp.ne.s32.totalorder %s103, %s106
      %p112 = scmp.eq.s32.totalorder %s25, 0
      %p113 = por %p111, %p112
      %p114 = scmp.ne.s32.totalorder %s103, %s106
      %p115 = scmp.eq.s32.totalorder %s30, 3
      %p116 = por %p114, %p115
      %p117 = scmp.ne.s32.totalorder %s106, %s107
      %p118 = scmp.eq.s32.totalorder %s30, 0
      %p119 = por %p117, %p118
      %p120 = scmp.ne.s32.totalorder %s106, %s107
      %p121 = scmp.eq.s32.totalorder %s31, 3
      %p122 = por %p120, %p121
      %p124 = scmp.ne.s32.totalorder %s107, %s123
      %p125 = scmp.eq.s32.totalorder %s31, 0
      %p126 = por %p124, %p125
      %s127 = ssub.s32 %s25, %s32
      %p128 = scmp.eq.s32.totalorder %s127, 0
      %s130 = sadd.s32 %s129, 1
      %s131 = scalar_select %p128, %s129, %s130
      %p134 = pneg %p128
      %p135 = scmp.eq.s32.totalorder %s25, 3
      %p136 = por %p134, %p135
      %p137 = scmp.ne.s32.totalorder %s129, %s132
      %p138 = scmp.eq.s32.totalorder %s25, 0
      %p139 = por %p137, %p138
      %p140 = scmp.ne.s32.totalorder %s129, %s132
      %p141 = scmp.eq.s32.totalorder %s30, 3
      %p142 = por %p140, %p141
      %p143 = scmp.ne.s32.totalorder %s132, %s133
      %p144 = scmp.eq.s32.totalorder %s30, 0
      %p145 = por %p143, %p144
      %p146 = scmp.ne.s32.totalorder %s132, %s133
      %p147 = scmp.eq.s32.totalorder %s31, 3
      %p148 = por %p146, %p147
      %p150 = scmp.ne.s32.totalorder %s133, %s149
      %p151 = scmp.eq.s32.totalorder %s31, 0
      %p152 = por %p150, %p151
      %s153 = ssub.s32 %s25, %s32
      %p154 = scmp.eq.s32.totalorder %s153, 0
      %s156 = sadd.s32 %s155, 1
      %s157 = scalar_select %p154, %s155, %s156
      %p160 = pneg %p154
      %p161 = scmp.eq.s32.totalorder %s25, 3
      %p162 = por %p160, %p161
      %p163 = scmp.ne.s32.totalorder %s155, %s158
      %p164 = scmp.eq.s32.totalorder %s25, 0
      %p165 = por %p163, %p164
      %p166 = scmp.ne.s32.totalorder %s155, %s158
      %p167 = scmp.eq.s32.totalorder %s30, 3
      %p168 = por %p166, %p167
      %p169 = scmp.ne.s32.totalorder %s158, %s159
      %p170 = scmp.eq.s32.totalorder %s30, 0
      %p171 = por %p169, %p170
      %p172 = scmp.ne.s32.totalorder %s158, %s159
      %p173 = scmp.eq.s32.totalorder %s31, 3
      %p174 = por %p172, %p173
      %p176 = scmp.ne.s32.totalorder %s159, %s175
      %p177 = scmp.eq.s32.totalorder %s31, 0
      %p178 = por %p176, %p177
      %s179 = ssub.s32 %s25, %s32
      %p180 = scmp.eq.s32.totalorder %s179, 0
      %s182 = sadd.s32 %s181, 1
      %s183 = scalar_select %p180, %s181, %s182
      %p186 = pneg %p180
      %p187 = scmp.eq.s32.totalorder %s25, 3
      %p188 = por %p186, %p187
      %p189 = scmp.ne.s32.totalorder %s181, %s184
      %p190 = scmp.eq.s32.totalorder %s25, 0
      %p191 = por %p189, %p190
      %p192 = scmp.ne.s32.totalorder %s181, %s184
      %p193 = scmp.eq.s32.totalorder %s30, 3
      %p194 = por %p192, %p193
      %p195 = scmp.ne.s32.totalorder %s184, %s185
      %p196 = scmp.eq.s32.totalorder %s30, 0
      %p197 = por %p195, %p196
      %p198 = scmp.ne.s32.totalorder %s184, %s185
      %p199 = scmp.eq.s32.totalorder %s31, 3
      %p200 = por %p198, %p199
      %p202 = scmp.ne.s32.totalorder %s185, %s201
      %p203 = scmp.eq.s32.totalorder %s31, 0
      %p204 = por %p202, %p203
      %s206 = sadd.s32 %s205, 1
      %p209 = scmp.eq.s32.totalorder %s25, 3
      %p210 = scmp.ne.s32.totalorder %s205, %s207
      %p211 = scmp.eq.s32.totalorder %s25, 0
      %p212 = por %p210, %p211
      %p213 = scmp.ne.s32.totalorder %s205, %s207
      %p214 = scmp.eq.s32.totalorder %s30, 3
      %p215 = por %p213, %p214
      %p216 = scmp.ne.s32.totalorder %s207, %s208
      %p217 = scmp.eq.s32.totalorder %s30, 0
      %p218 = por %p216, %p217
      %p219 = scmp.ne.s32.totalorder %s207, %s208
      %p220 = scmp.eq.s32.totalorder %s31, 3
      %p221 = por %p219, %p220
      %p223 = scmp.ne.s32.totalorder %s208, %s222
      %p224 = scmp.eq.s32.totalorder %s31, 0
      %p225 = por %p223, %p224
      %s227 = sadd.s32 %s226, 1
      %p230 = scmp.eq.s32.totalorder %s25, 3
      %p231 = scmp.ne.s32.totalorder %s226, %s228
      %p232 = scmp.eq.s32.totalorder %s25, 0
      %p233 = por %p231, %p232
      %p234 = scmp.ne.s32.totalorder %s226, %s228
      %p235 = scmp.eq.s32.totalorder %s30, 3
      %p236 = por %p234, %p235
      %p237 = scmp.ne.s32.totalorder %s228, %s229
      %p238 = scmp.eq.s32.totalorder %s30, 0
      %p239 = por %p237, %p238
      %p240 = scmp.ne.s32.totalorder %s228, %s229
      %p241 = scmp.eq.s32.totalorder %s31, 3
      %p242 = por %p240, %p241
      %p244 = scmp.ne.s32.totalorder %s229, %s243
      %p245 = scmp.eq.s32.totalorder %s31, 0
      %p246 = por %p244, %p245
      %s248 = sadd.s32 %s247, 1
      %p251 = scmp.eq.s32.totalorder %s25, 3
      %p252 = scmp.ne.s32.totalorder %s247, %s249
      %p253 = scmp.eq.s32.totalorder %s25, 0
      %p254 = por %p252, %p253
      %p255 = scmp.ne.s32.totalorder %s247, %s249
      %p256 = scmp.eq.s32.totalorder %s30, 3
      %p257 = por %p255, %p256
      %p258 = scmp.ne.s32.totalorder %s249, %s250
      %p259 = scmp.eq.s32.totalorder %s30, 0
      %p260 = por %p258, %p259
      %p261 = scmp.ne.s32.totalorder %s249, %s250
      %p262 = scmp.eq.s32.totalorder %s31, 3
      %p263 = por %p261, %p262
      %p265 = scmp.ne.s32.totalorder %s250, %s264
      %p266 = scmp.eq.s32.totalorder %s31, 0
      %p267 = por %p265, %p266
      %s269 = sadd.s32 %s268, 1
      %p272 = scmp.eq.s32.totalorder %s25, 3
      %p273 = scmp.ne.s32.totalorder %s268, %s270
      %p274 = scmp.eq.s32.totalorder %s25, 0
      %p275 = por %p273, %p274
      %p276 = scmp.ne.s32.totalorder %s268, %s270
      %p277 = scmp.eq.s32.totalorder %s30, 3
      %p278 = por %p276, %p277
      %p279 = scmp.ne.s32.totalorder %s270, %s271
      %p280 = scmp.eq.s32.totalorder %s30, 0
      %p281 = por %p279, %p280
      %p282 = scmp.ne.s32.totalorder %s270, %s271
      %p283 = scmp.eq.s32.totalorder %s31, 3
      %p284 = por %p282, %p283
      %p286 = scmp.ne.s32.totalorder %s271, %s285
      %p287 = scmp.eq.s32.totalorder %s31, 0
      %p288 = por %p286, %p287
      %s290 = sadd.s32 %s289, 1
      %p293 = scmp.eq.s32.totalorder %s25, 3
      %p294 = scmp.ne.s32.totalorder %s289, %s291
      %p295 = scmp.eq.s32.totalorder %s25, 0
      %p296 = por %p294, %p295
      %p297 = scmp.ne.s32.totalorder %s289, %s291
      %p298 = scmp.eq.s32.totalorder %s30, 3
      %p299 = por %p297, %p298
      %p300 = scmp.ne.s32.totalorder %s291, %s292
      %p301 = scmp.eq.s32.totalorder %s30, 0
      %p302 = por %p300, %p301
      %p303 = scmp.ne.s32.totalorder %s291, %s292
      %p304 = scmp.eq.s32.totalorder %s31, 3
      %p305 = por %p303, %p304
      %p307 = scmp.ne.s32.totalorder %s292, %s306
      %p308 = scmp.eq.s32.totalorder %s31, 0
      %p309 = por %p307, %p308
      %s310 = ssub.s32 %s25, %s32
      %p311 = scmp.eq.s32.totalorder %s310, 0
      %s313 = sadd.s32 %s312, 1
      %s314 = scalar_select %p311, %s312, %s313
      %p317 = pneg %p311
      %p318 = scmp.eq.s32.totalorder %s25, 3
      %p319 = por %p317, %p318
      %p320 = scmp.ne.s32.totalorder %s312, %s315
      %p321 = scmp.eq.s32.totalorder %s25, 0
      %p322 = por %p320, %p321
      %p323 = scmp.ne.s32.totalorder %s312, %s315
      %p324 = scmp.eq.s32.totalorder %s30, 3
      %p325 = por %p323, %p324
      %p326 = scmp.ne.s32.totalorder %s315, %s316
      %p327 = scmp.eq.s32.totalorder %s30, 0
      %p328 = por %p326, %p327
      %p329 = scmp.ne.s32.totalorder %s315, %s316
      %p330 = scmp.eq.s32.totalorder %s31, 3
      %p331 = por %p329, %p330
      %p333 = scmp.ne.s32.totalorder %s316, %s332
      %p334 = scmp.eq.s32.totalorder %s31, 0
      %p335 = por %p333, %p334
      %s337 = sadd.s32 %s336, 1
      %p340 = scmp.eq.s32.totalorder %s25, 3
      %p341 = scmp.ne.s32.totalorder %s336, %s338
      %p342 = scmp.eq.s32.totalorder %s25, 0
      %p343 = por %p341, %p342
      %p344 = scmp.ne.s32.totalorder %s336, %s338
      %p345 = scmp.eq.s32.totalorder %s30, 3
      %p346 = por %p344, %p345
      %p347 = scmp.ne.s32.totalorder %s338, %s339
      %p348 = scmp.eq.s32.totalorder %s30, 0
      %p349 = por %p347, %p348
      %p350 = scmp.ne.s32.totalorder %s338, %s339
      %p351 = scmp.eq.s32.totalorder %s31, 3
      %p352 = por %p350, %p351
      %p354 = scmp.ne.s32.totalorder %s339, %s353
      %p355 = scmp.eq.s32.totalorder %s31, 0
      %p356 = por %p354, %p355
      %s358 = sadd.s32 %s357, 1
      %p361 = scmp.eq.s32.totalorder %s25, 3
      %p362 = scmp.ne.s32.totalorder %s357, %s359
      %p363 = scmp.eq.s32.totalorder %s25, 0
      %p364 = por %p362, %p363
      %p365 = scmp.ne.s32.totalorder %s357, %s359
      %p366 = scmp.eq.s32.totalorder %s30, 3
      %p367 = por %p365, %p366
      %p368 = scmp.ne.s32.totalorder %s359, %s360
      %p369 = scmp.eq.s32.totalorder %s30, 0
      %p370 = por %p368, %p369
      %p371 = scmp.ne.s32.totalorder %s359, %s360
      %p372 = scmp.eq.s32.totalorder %s31, 3
      %p373 = por %p371, %p372
      %p375 = scmp.ne.s32.totalorder %s360, %s374
      %p376 = scmp.eq.s32.totalorder %s31, 0
      %p377 = por %p375, %p376
      %p378 = scmp.le.s32.totalorder 1, %s25
      %p379 = scmp.lt.s32.totalorder %s25, 5
      %p380 = pnand %p378, %p379
      %p381 = pneg %p380
      // Predicated region
      $region9: #{tpu_custom_call.1} parent=5 // pred_check
        _
      $region10: #{tpu_custom_call.1} parent=5 // pred_check_branch
        %383 = sbr.rel (%p380) target = $region12
      $region11: #{tpu_custom_call.1} parent=5 // pred_region
        %s384 = ssub.s32 %s25, 1
        // Predicated region
        $region13: #{tpu_custom_call.1} parent=11 // pred_check
          %p385 = pneg %p72
        $region14: #{tpu_custom_call.1} parent=11 // pred_check_branch
          %387 = sbr.rel (%p385) target = $region16
        $region15: #{tpu_custom_call.1} parent=11 // pred_region
          _
        $region16: #{tpu_custom_call.1} parent=11 // pred_fallthru
          _
        // Predicated region
        $region17: #{tpu_custom_call.1} parent=11 // pred_check
          %p388 = pneg %p93
        $region18: #{tpu_custom_call.1} parent=11 // pred_check_branch
          %390 = sbr.rel (%p388) target = $region20
        $region19: #{tpu_custom_call.1} parent=11 // pred_region
          _
        $region20: #{tpu_custom_call.1} parent=11 // pred_fallthru
          _
        // Predicated region
        $region21: #{tpu_custom_call.1} parent=11 // pred_check
          %p391 = pneg %p218
        $region22: #{tpu_custom_call.1} parent=11 // pred_check_branch
          %393 = sbr.rel (%p391) target = $region24
        $region23: #{tpu_custom_call.1} parent=11 // pred_region
          _
        $region24: #{tpu_custom_call.1} parent=11 // pred_fallthru
          _
        // Predicated region
        $region25: #{tpu_custom_call.1} parent=11 // pred_check
          %p394 = pneg %p239
        $region26: #{tpu_custom_call.1} parent=11 // pred_check_branch
          %396 = sbr.rel (%p394) target = $region28
        $region27: #{tpu_custom_call.1} parent=11 // pred_region
          _
        $region28: #{tpu_custom_call.1} parent=11 // pred_fallthru
          _
        // Predicated region
        $region29: #{tpu_custom_call.1} parent=11 // pred_check
          %p397 = pneg %p260
        $region30: #{tpu_custom_call.1} parent=11 // pred_check_branch
          %399 = sbr.rel (%p397) target = $region32
        $region31: #{tpu_custom_call.1} parent=11 // pred_region
          _
        $region32: #{tpu_custom_call.1} parent=11 // pred_fallthru
          _
        // Predicated region
        $region33: #{tpu_custom_call.1} parent=11 // pred_check
          %p400 = pneg %p281
        $region34: #{tpu_custom_call.1} parent=11 // pred_check_branch
          %402 = sbr.rel (%p400) target = $region36
        $region35: #{tpu_custom_call.1} parent=11 // pred_region
          _
        $region36: #{tpu_custom_call.1} parent=11 // pred_fallthru
          _
        // Predicated region
        $region37: #{tpu_custom_call.1} parent=11 // pred_check
          %p403 = pneg %p302
        $region38: #{tpu_custom_call.1} parent=11 // pred_check_branch
          %405 = sbr.rel (%p403) target = $region40
        $region39: #{tpu_custom_call.1} parent=11 // pred_region
          _
        $region40: #{tpu_custom_call.1} parent=11 // pred_fallthru
          _
      $region12: #{tpu_custom_call.1} parent=5 // pred_fallthru
        _
      %p406 = scmp.lt.s32.totalorder %s25, 4
      // Predicated region
      $region41: #{tpu_custom_call.1} parent=5 // pred_check
        %p407 = pneg %p406
      $region42: #{tpu_custom_call.1} parent=5 // pred_check_branch
        %409 = sbr.rel (%p407) target = $region44
      $region43: #{tpu_custom_call.1} parent=5 // pred_region
        // Predicated region
        $region45: #{tpu_custom_call.1} parent=43 // pred_check
          %p410 = pneg %p45
        $region46: #{tpu_custom_call.1} parent=43 // pred_check_branch
          %412 = sbr.rel (%p410) target = $region48
        $region47: #{tpu_custom_call.1} parent=43 // pred_region
          %p413 = scmp.lt.s32.totalorder %s25, 3
          %s414 = scalar_select %p413, %s25, 3
          %s415 = smul.addr %s414, 8
          %s416 = scalar_lea.vmem %s0, %s415
        $region48: #{tpu_custom_call.1} parent=43 // pred_fallthru
          _
        // Predicated region
        $region49: #{tpu_custom_call.1} parent=43 // pred_check
          %p417 = pneg %p113
        $region50: #{tpu_custom_call.1} parent=43 // pred_check_branch
          %419 = sbr.rel (%p417) target = $region52
        $region51: #{tpu_custom_call.1} parent=43 // pred_region
          %p420 = scmp.lt.s32.totalorder %s25, 3
          %s421 = scalar_select %p420, %s25, 3
          %s422 = smul.addr %s421, 4
          %s423 = smul.addr %s422, 8
          %s424 = scalar_lea.vmem %s3, %s423
        $region52: #{tpu_custom_call.1} parent=43 // pred_fallthru
          _
        // Predicated region
        $region53: #{tpu_custom_call.1} parent=43 // pred_check
          %p425 = pneg %p139
        $region54: #{tpu_custom_call.1} parent=43 // pred_check_branch
          %427 = sbr.rel (%p425) target = $region56
        $region55: #{tpu_custom_call.1} parent=43 // pred_region
          %p428 = scmp.lt.s32.totalorder %s25, 3
          %s429 = scalar_select %p428, %s25, 3
          %s430 = smul.addr %s429, 4
          %s431 = smul.addr %s430, 8
          %s432 = scalar_lea.vmem %s4, %s431
        $region56: #{tpu_custom_call.1} parent=43 // pred_fallthru
          _
        // Predicated region
        $region57: #{tpu_custom_call.1} parent=43 // pred_check
          %p433 = pneg %p165
        $region58: #{tpu_custom_call.1} parent=43 // pred_check_branch
          %435 = sbr.rel (%p433) target = $region60
        $region59: #{tpu_custom_call.1} parent=43 // pred_region
          %p436 = scmp.lt.s32.totalorder %s25, 3
          %s437 = scalar_select %p436, %s25, 3
          %s438 = smul.addr %s437, 4
          %s439 = smul.addr %s438, 8
          %s440 = scalar_lea.vmem %s5, %s439
        $region60: #{tpu_custom_call.1} parent=43 // pred_fallthru
          _
        // Predicated region
        $region61: #{tpu_custom_call.1} parent=43 // pred_check
          %p441 = pneg %p191
        $region62: #{tpu_custom_call.1} parent=43 // pred_check_branch
          %443 = sbr.rel (%p441) target = $region64
        $region63: #{tpu_custom_call.1} parent=43 // pred_region
          %p444 = scmp.lt.s32.totalorder %s25, 3
          %s445 = scalar_select %p444, %s25, 3
          %s446 = scalar_lea.vmem %s6, %s445
        $region64: #{tpu_custom_call.1} parent=43 // pred_fallthru
          _
      $region44: #{tpu_custom_call.1} parent=5 // pred_fallthru
        _
      %p447 = scmp.le.s32.totalorder 1, %s25
      %p448 = scmp.lt.s32.totalorder %s25, 5
      %p449 = pnand %p447, %p448
      %p450 = pneg %p449
      // Predicated region
      $region65: #{tpu_custom_call.1} parent=5 // pred_check
        _
      $region66: #{tpu_custom_call.1} parent=5 // pred_check_branch
        %452 = sbr.rel (%p449) target = $region68
      $region67: #{tpu_custom_call.1} parent=5 // pred_region
        %s453 = ssub.s32 %s25, 1
        %p454 = scmp.lt.s32.totalorder %s30, 3
        %s455 = scalar_select %p454, %s30, 3
        %s456 = smul.addr %s455, 8
        %s457 = scalar_lea.vmem %s0, %s456
        %p458 = pneg %p51
        %p459 = pneg %p48
        %p460 = pneg %p72
        %p461 = pneg %p69
        %p462 = pneg %p93
        %p463 = pneg %p90
        %p464 = scmp.lt.s32.totalorder %s30, 3
        %s465 = scalar_select %p464, %s30, 3
        %s466 = smul.addr %s465, 4
        %s467 = smul.addr %s466, 8
        %s468 = scalar_lea.vmem %s3, %s467
        %p469 = pneg %p119
        %p470 = pneg %p116
        %p471 = scmp.lt.s32.totalorder %s30, 3
        %s472 = scalar_select %p471, %s30, 3
        %s473 = smul.addr %s472, 4
        %s474 = smul.addr %s473, 8
        %s475 = scalar_lea.vmem %s4, %s474
        %p476 = pneg %p145
        %p477 = pneg %p142
        %p478 = scmp.lt.s32.totalorder %s30, 3
        %s479 = scalar_select %p478, %s30, 3
        %s480 = smul.addr %s479, 4
        %s481 = smul.addr %s480, 8
        %s482 = scalar_lea.vmem %s5, %s481
        %p483 = pneg %p171
        %p484 = pneg %p168
        %p485 = scmp.lt.s32.totalorder %s30, 3
        %s486 = scalar_select %p485, %s30, 3
        %s487 = scalar_lea.vmem %s6, %s486
        %p488 = pneg %p197
        %p489 = pneg %p194
        %p490 = pneg %p218
        %p491 = pneg %p215
        %p492 = pneg %p239
        %p493 = pneg %p236
        %p494 = pneg %p260
        %p495 = pneg %p257
        %p496 = pneg %p281
        %p497 = pneg %p278
        %p498 = pneg %p302
        %p499 = pneg %p299
        %p500 = pneg %p328
        %p501 = pneg %p325
        %s502 = sand.u32 %s315, 1
        %s503 = scalar_lea.sflag [#allocation5], %s502
        %s504 = sand.u32 %s315, 1
        %s505 = smul.addr %s504, 8
        %s506 = scalar_lea.vmem [#allocation4], %s505
        %p507 = pneg %p349
        %p508 = pneg %p346
        %p509 = pneg %p370
        %p510 = pneg %p367
        %p511 = scmp.lt.s32.totalorder %s30, 3
        %s512 = scalar_select %p511, %s30, 3
        %s513 = smul.addr %s512, 8
        %s514 = scalar_lea.vmem %s0, %s513
        %p515 = scmp.lt.s32.totalorder %s30, 3
        %s516 = scalar_select %p515, %s30, 3
        %s517 = smul.addr %s516, 4
        %s518 = smul.addr %s517, 8
        %s519 = scalar_lea.vmem %s3, %s518
        %p520 = scmp.lt.s32.totalorder %s30, 3
        %s521 = scalar_select %p520, %s30, 3
        %s522 = smul.addr %s521, 4
        %s523 = smul.addr %s522, 8
        %s524 = scalar_lea.vmem %s4, %s523
        %p525 = scmp.lt.s32.totalorder %s30, 3
        %s526 = scalar_select %p525, %s30, 3
        %s527 = smul.addr %s526, 4
        %s528 = smul.addr %s527, 8
        %s529 = scalar_lea.vmem %s5, %s528
        %p530 = scmp.lt.s32.totalorder %s30, 3
        %s531 = scalar_select %p530, %s30, 3
        %s532 = scalar_lea.vmem %s6, %s531
        %p533 = scmp.eq.s32.totalorder %s30, 0
        // Predicated region
        $region69: #{tpu_custom_call.1} parent=67 // pred_check
          %p534 = pneg %p533
        $region70: #{tpu_custom_call.1} parent=67 // pred_check_branch
          %536 = sbr.rel (%p534) target = $region72
        $region71: #{tpu_custom_call.1} parent=67 // pred_region
          %v537 = vld [vmem:[%s1] sm:$0xff]
          %vm538 = vcmask 261120
          %539 = vst.msk [vmem:[#allocation2] sm:$0xff] %vm538, %v537
          %v540 = vld [vmem:[%s2] sm:$0xff]
          %541 = vst.msk [vmem:[#allocation3] sm:$0xff] %vm538, %v540
        $region72: #{tpu_custom_call.1} parent=67 // pred_fallthru
          _
        %v542 = vld [vmem:[%s514] sm:$0xff]
        %v543 = vld [vmem:[#allocation2] sm:$0xff]
        %v544 = vld [vmem:[#allocation3] sm:$0xff]
        %v545 = vld [vmem:[%s519] sm:$0xff]
        %v546 = vld [vmem:[%s519 + $0x8] sm:$0xff]
        %v547 = vld [vmem:[%s519 + $0x10] sm:$0xff]
        %v548 = vld [vmem:[%s519 + $0x18] sm:$0xff]
        %v549 = vld [vmem:[%s524] sm:$0xff]
        %v550 = vld [vmem:[%s524 + $0x8] sm:$0xff]
        %v551 = vld [vmem:[%s524 + $0x10] sm:$0xff]
        %v552 = vld [vmem:[%s524 + $0x18] sm:$0xff]
        %vm553 = vcmask 261120
        %v555 = vsel %vm553, %v542, 0
        %557 = vmatprep.subr.mxu0 0.0
        %558 = vmatpush1.msra.mxu0 %v549
        %559 = vmatprep.subr.mxu0 0.0
        %560 = vmatpush1.msra.mxu0 %v550
        %561 = vmatprep.subr.mxu0 0.0
        %562 = vmatpush1.msra.mxu0 %v551
        %563 = vmatprep.subr.mxu0 0.0
        %564 = vmatpush1.msra.mxu0 %v552
        %565 = vmatprep.subr.mxu0 0.0
        %566 = vmatpush1.msra.mxu0 0.0
        %567 = vmatprep.subr.mxu0 0.0
        %568 = vmatpush1.msra.mxu0 0.0
        %569 = vmatprep.subr.mxu0 0.0
        %570 = vmatpush1.msra.mxu0 0.0
        %571 = vmatprep.subr.mxu0 0.0
        %572 = vmatpush1.msra.mxu0 0.0
        %573 = vmatprep.subr.mxu0 0.0
        %574 = vmatpush1.msra.mxu0 0.0
        %575 = vmatprep.subr.mxu0 0.0
        %576 = vmatpush1.msra.mxu0 0.0
        %577 = vmatprep.subr.mxu0 0.0
        %578 = vmatpush1.msra.mxu0 0.0
        %579 = vmatprep.subr.mxu0 0.0
        %580 = vmatpush1.msra.mxu0 0.0
        %581 = vmatprep.subr.mxu0 0.0
        %582 = vmatpush1.msra.mxu0 0.0
        %583 = vmatprep.subr.mxu0 0.0
        %584 = vmatpush1.msra.mxu0 0.0
        %585 = vmatprep.subr.mxu0 0.0
        %586 = vmatpush1.msra.mxu0 0.0
        %587 = vmatprep.subr.mxu0 0.0
        %588 = vmatpush1.msra.mxu0 0.0
        %589 = vmatprep.subr.mxu0 0.0
        %590 = vmatpush1.msra.mxu0 0.0
        %591 = vmatprep.subr.mxu0 0.0
        %592 = vmatpush1.msra.mxu0 0.0
        %593 = vmatprep.subr.mxu0 0.0
        %594 = vmatpush1.msra.mxu0 0.0
        %595 = vmatprep.subr.mxu0 0.0
        %596 = vmatpush1.msra.mxu0 0.0
        %597 = vmatprep.subr.mxu0 0.0
        %598 = vmatpush1.msra.mxu0 0.0
        %599 = vmatprep.subr.mxu0 0.0
        %600 = vmatpush1.msra.mxu0 0.0
        %601 = vmatprep.subr.mxu0 0.0
        %602 = vmatpush1.msra.mxu0 0.0
        %603 = vmatprep.subr.mxu0 0.0
        %604 = vmatpush1.msra.mxu0 0.0
        %605 = vmatprep.subr.mxu0 0.0
        %606 = vmatpush1.msra.mxu0 0.0
        %607 = vmatprep.subr.mxu0 0.0
        %608 = vmatpush1.msra.mxu0 0.0
        %609 = vmatprep.subr.mxu0 0.0
        %610 = vmatpush1.msra.mxu0 0.0
        %611 = vmatprep.subr.mxu0 0.0
        %612 = vmatpush1.msra.mxu0 0.0
        %613 = vmatprep.subr.mxu0 0.0
        %614 = vmatpush1.msra.mxu0 0.0
        %615 = vmatprep.subr.mxu0 0.0
        %616 = vmatpush1.msra.mxu0 0.0
        %617 = vmatprep.subr.mxu0 0.0
        %618 = vmatpush1.msra.mxu0 0.0
        %619 = vmatprep.subr.mxu0 0.0
        %620 = vmatpush1.msra.mxu0 0.0
        %621 = vmatprep.mubr.f32.mxu0 0.0
        %622 = vmatmul.mubr.f32.gmra.mrb[0].mxu0 %v555
        %v623 = vpop.f32.mrb[0].mxu0
        %v624 = vadd.f32 0.0, %v623
        %v625 = vpop.f32.mrb[0].mxu0
        %626 = vdwg.mxu0
        %v628 = vsel %vm553, %v543, 0
        %630 = vmatprep.subr.mxu0 0.0
        %631 = vmatpush1.msra.mxu0 %v545
        %632 = vmatprep.subr.mxu0 0.0
        %633 = vmatpush1.msra.mxu0 %v546
        %634 = vmatprep.subr.mxu0 0.0
        %635 = vmatpush1.msra.mxu0 %v547
        %636 = vmatprep.subr.mxu0 0.0
        %637 = vmatpush1.msra.mxu0 %v548
        %638 = vmatprep.subr.mxu0 0.0
        %639 = vmatpush1.msra.mxu0 0.0
        %640 = vmatprep.subr.mxu0 0.0
        %641 = vmatpush1.msra.mxu0 0.0
        %642 = vmatprep.subr.mxu0 0.0
        %643 = vmatpush1.msra.mxu0 0.0
        %644 = vmatprep.subr.mxu0 0.0
        %645 = vmatpush1.msra.mxu0 0.0
        %646 = vmatprep.subr.mxu0 0.0
        %647 = vmatpush1.msra.mxu0 0.0
        %648 = vmatprep.subr.mxu0 0.0
        %649 = vmatpush1.msra.mxu0 0.0
        %650 = vmatprep.subr.mxu0 0.0
        %651 = vmatpush1.msra.mxu0 0.0
        %652 = vmatprep.subr.mxu0 0.0
        %653 = vmatpush1.msra.mxu0 0.0
        %654 = vmatprep.subr.mxu0 0.0
        %655 = vmatpush1.msra.mxu0 0.0
        %656 = vmatprep.subr.mxu0 0.0
        %657 = vmatpush1.msra.mxu0 0.0
        %658 = vmatprep.subr.mxu0 0.0
        %659 = vmatpush1.msra.mxu0 0.0
        %660 = vmatprep.subr.mxu0 0.0
        %661 = vmatpush1.msra.mxu0 0.0
        %662 = vmatprep.subr.mxu0 0.0
        %663 = vmatpush1.msra.mxu0 0.0
        %664 = vmatprep.subr.mxu0 0.0
        %665 = vmatpush1.msra.mxu0 0.0
        %666 = vmatprep.subr.mxu0 0.0
        %667 = vmatpush1.msra.mxu0 0.0
        %668 = vmatprep.subr.mxu0 0.0
        %669 = vmatpush1.msra.mxu0 0.0
        %670 = vmatprep.subr.mxu0 0.0
        %671 = vmatpush1.msra.mxu0 0.0
        %672 = vmatprep.subr.mxu0 0.0
        %673 = vmatpush1.msra.mxu0 0.0
        %674 = vmatprep.subr.mxu0 0.0
        %675 = vmatpush1.msra.mxu0 0.0
        %676 = vmatprep.subr.mxu0 0.0
        %677 = vmatpush1.msra.mxu0 0.0
        %678 = vmatprep.subr.mxu0 0.0
        %679 = vmatpush1.msra.mxu0 0.0
        %680 = vmatprep.subr.mxu0 0.0
        %681 = vmatpush1.msra.mxu0 0.0
        %682 = vmatprep.subr.mxu0 0.0
        %683 = vmatpush1.msra.mxu0 0.0
        %684 = vmatprep.subr.mxu0 0.0
        %685 = vmatpush1.msra.mxu0 0.0
        %686 = vmatprep.subr.mxu0 0.0
        %687 = vmatpush1.msra.mxu0 0.0
        %688 = vmatprep.subr.mxu0 0.0
        %689 = vmatpush1.msra.mxu0 0.0
        %690 = vmatprep.subr.mxu0 0.0
        %691 = vmatpush1.msra.mxu0 0.0
        %692 = vmatprep.subr.mxu0 0.0
        %693 = vmatpush1.msra.mxu0 0.0
        %694 = vmatprep.mubr.f32.mxu0 0.0
        %695 = vmatmul.mubr.f32.gmra.mrb[0].mxu0 %v628
        %v696 = vpop.f32.mrb[0].mxu0
        %v697 = vadd.f32 %v624, %v696
        %v698 = vpop.f32.mrb[0].mxu0
        %699 = vdwg.mxu0
        %v700 = vld [vmem:[%s529] sm:$0xff]
        %v701 = vld [vmem:[%s529 + $0x8] sm:$0xff]
        %v702 = vld [vmem:[%s529 + $0x10] sm:$0xff]
        %v703 = vld [vmem:[%s529 + $0x18] sm:$0xff]
        %v705 = vsel %vm553, %v544, 0
        %707 = vmatprep.subr.mxu0 0.0
        %708 = vmatpush1.msra.mxu0 %v700
        %709 = vmatprep.subr.mxu0 0.0
        %710 = vmatpush1.msra.mxu0 %v701
        %711 = vmatprep.subr.mxu0 0.0
        %712 = vmatpush1.msra.mxu0 %v702
        %713 = vmatprep.subr.mxu0 0.0
        %714 = vmatpush1.msra.mxu0 %v703
        %715 = vmatprep.subr.mxu0 0.0
        %716 = vmatpush1.msra.mxu0 0.0
        %717 = vmatprep.subr.mxu0 0.0
        %718 = vmatpush1.msra.mxu0 0.0
        %719 = vmatprep.subr.mxu0 0.0
        %720 = vmatpush1.msra.mxu0 0.0
        %721 = vmatprep.subr.mxu0 0.0
        %722 = vmatpush1.msra.mxu0 0.0
        %723 = vmatprep.subr.mxu0 0.0
        %724 = vmatpush1.msra.mxu0 0.0
        %725 = vmatprep.subr.mxu0 0.0
        %726 = vmatpush1.msra.mxu0 0.0
        %727 = vmatprep.subr.mxu0 0.0
        %728 = vmatpush1.msra.mxu0 0.0
        %729 = vmatprep.subr.mxu0 0.0
        %730 = vmatpush1.msra.mxu0 0.0
        %731 = vmatprep.subr.mxu0 0.0
        %732 = vmatpush1.msra.mxu0 0.0
        %733 = vmatprep.subr.mxu0 0.0
        %734 = vmatpush1.msra.mxu0 0.0
        %735 = vmatprep.subr.mxu0 0.0
        %736 = vmatpush1.msra.mxu0 0.0
        %737 = vmatprep.subr.mxu0 0.0
        %738 = vmatpush1.msra.mxu0 0.0
        %739 = vmatprep.subr.mxu0 0.0
        %740 = vmatpush1.msra.mxu0 0.0
        %741 = vmatprep.subr.mxu0 0.0
        %742 = vmatpush1.msra.mxu0 0.0
        %743 = vmatprep.subr.mxu0 0.0
        %744 = vmatpush1.msra.mxu0 0.0
        %745 = vmatprep.subr.mxu0 0.0
        %746 = vmatpush1.msra.mxu0 0.0
        %747 = vmatprep.subr.mxu0 0.0
        %748 = vmatpush1.msra.mxu0 0.0
        %749 = vmatprep.subr.mxu0 0.0
        %750 = vmatpush1.msra.mxu0 0.0
        %751 = vmatprep.subr.mxu0 0.0
        %752 = vmatpush1.msra.mxu0 0.0
        %753 = vmatprep.subr.mxu0 0.0
        %754 = vmatpush1.msra.mxu0 0.0
        %755 = vmatprep.subr.mxu0 0.0
        %756 = vmatpush1.msra.mxu0 0.0
        %757 = vmatprep.subr.mxu0 0.0
        %758 = vmatpush1.msra.mxu0 0.0
        %759 = vmatprep.subr.mxu0 0.0
        %760 = vmatpush1.msra.mxu0 0.0
        %761 = vmatprep.subr.mxu0 0.0
        %762 = vmatpush1.msra.mxu0 0.0
        %763 = vmatprep.subr.mxu0 0.0
        %764 = vmatpush1.msra.mxu0 0.0
        %765 = vmatprep.subr.mxu0 0.0
        %766 = vmatpush1.msra.mxu0 0.0
        %767 = vmatprep.subr.mxu0 0.0
        %768 = vmatpush1.msra.mxu0 0.0
        %769 = vmatprep.subr.mxu0 0.0
        %770 = vmatpush1.msra.mxu0 0.0
        %771 = vmatprep.mubr.f32.mxu0 0.0
        %772 = vmatmul.mubr.f32.gmra.mrb[0].mxu0 %v705
        %v773 = vpop.f32.mrb[0].mxu0
        %v774 = vadd.f32 0.0, %v773
        %v775 = vpop.f32.mrb[0].mxu0
        %776 = vdwg.mxu0
        %v777 = vadd.f32 %v697, %v774
        %v778 = vld [vmem:[%s532] sm:$0x1]
        %v780 = vlaneseq
        %v781 = vshrl.u32 %v780, 7
        %v782 = vsub.s32 0, %v781
        %v783 = vrot.slane %v778, %v782
        %v785 = vadd.f32 %v777, %v783
        %vm786 = vcmask 15360
        %v787 = vsel %vm786, %v785, -inf
        %788 = vmax.xlane.f32.xlu0 %v787
        %v789 = vpop.xlane.xlu0 %788
        %v790 = vsub.f32 %v785, %v789
        %v791 = vmul.f32 %v790, 1.442695
        %v792 = vpow.pop %v791
        %v793 = vsel %vm786, %v792, 0.0
        %794 = vadd.xlane.f32.xlu0 %v793
        %v795 = vpop.xlane.xlu0 %794
        %v796 = vrcp.pop %v795
        %v797 = vmul.f32 %v792, %v796
        %v798 = vld [vmem:[%s7] sm:$0xff]
        %v799 = vld [vmem:[%s7 + $0x8] sm:$0xff]
        %v800 = vld [vmem:[%s7 + $0x10] sm:$0xff]
        %v801 = vld [vmem:[%s7 + $0x18] sm:$0xff]
        %v802 = vld [vmem:[%s8] sm:$0xff]
        %v803 = vld [vmem:[%s8 + $0x8] sm:$0xff]
        %v804 = vld [vmem:[%s8 + $0x10] sm:$0xff]
        %v805 = vld [vmem:[%s8 + $0x18] sm:$0xff]
        %806 = vmatprep.subr.mxu0 0.0
        %807 = vmatpush1.msra.mxu0 %v802
        %808 = vmatprep.subr.mxu0 0.0
        %809 = vmatpush1.msra.mxu0 %v803
        %810 = vmatprep.subr.mxu0 0.0
        %811 = vmatpush1.msra.mxu0 %v804
        %812 = vmatprep.subr.mxu0 0.0
        %813 = vmatpush1.msra.mxu0 %v805
        %814 = vmatprep.subr.mxu0 0.0
        %815 = vmatpush1.msra.mxu0 0.0
        %816 = vmatprep.subr.mxu0 0.0
        %817 = vmatpush1.msra.mxu0 0.0
        %818 = vmatprep.subr.mxu0 0.0
        %819 = vmatpush1.msra.mxu0 0.0
        %820 = vmatprep.subr.mxu0 0.0
        %821 = vmatpush1.msra.mxu0 0.0
        %822 = vmatprep.subr.mxu0 0.0
        %823 = vmatpush1.msra.mxu0 0.0
        %824 = vmatprep.subr.mxu0 0.0
        %825 = vmatpush1.msra.mxu0 0.0
        %826 = vmatprep.subr.mxu0 0.0
        %827 = vmatpush1.msra.mxu0 0.0
        %828 = vmatprep.subr.mxu0 0.0
        %829 = vmatpush1.msra.mxu0 0.0
        %830 = vmatprep.subr.mxu0 0.0
        %831 = vmatpush1.msra.mxu0 0.0
        %832 = vmatprep.subr.mxu0 0.0
        %833 = vmatpush1.msra.mxu0 0.0
        %834 = vmatprep.subr.mxu0 0.0
        %835 = vmatpush1.msra.mxu0 0.0
        %836 = vmatprep.subr.mxu0 0.0
        %837 = vmatpush1.msra.mxu0 0.0
        %838 = vmatprep.subr.mxu0 0.0
        %839 = vmatpush1.msra.mxu0 0.0
        %840 = vmatprep.subr.mxu0 0.0
        %841 = vmatpush1.msra.mxu0 0.0
        %842 = vmatprep.subr.mxu0 0.0
        %843 = vmatpush1.msra.mxu0 0.0
        %844 = vmatprep.subr.mxu0 0.0
        %845 = vmatpush1.msra.mxu0 0.0
        %846 = vmatprep.subr.mxu0 0.0
        %847 = vmatpush1.msra.mxu0 0.0
        %848 = vmatprep.subr.mxu0 0.0
        %849 = vmatpush1.msra.mxu0 0.0
        %850 = vmatprep.subr.mxu0 0.0
        %851 = vmatpush1.msra.mxu0 0.0
        %852 = vmatprep.subr.mxu0 0.0
        %853 = vmatpush1.msra.mxu0 0.0
        %854 = vmatprep.subr.mxu0 0.0
        %855 = vmatpush1.msra.mxu0 0.0
        %856 = vmatprep.subr.mxu0 0.0
        %857 = vmatpush1.msra.mxu0 0.0
        %858 = vmatprep.subr.mxu0 0.0
        %859 = vmatpush1.msra.mxu0 0.0
        %860 = vmatprep.subr.mxu0 0.0
        %861 = vmatpush1.msra.mxu0 0.0
        %862 = vmatprep.subr.mxu0 0.0
        %863 = vmatpush1.msra.mxu0 0.0
        %864 = vmatprep.subr.mxu0 0.0
        %865 = vmatpush1.msra.mxu0 0.0
        %866 = vmatprep.subr.mxu0 0.0
        %867 = vmatpush1.msra.mxu0 0.0
        %868 = vmatprep.subr.mxu0 0.0
        %869 = vmatpush1.msra.mxu0 0.0
        %870 = vmatprep.mubr.f32.mxu0 0.0
        %871 = vmatmul.mubr.f32.gmra.mrb[0].mxu0 %v628
        %v872 = vpop.f32.mrb[0].mxu0
        %v873 = vadd.f32 0.0, %v872
        %v874 = vpop.f32.mrb[0].mxu0
        %875 = vdwg.mxu0
        %876 = vmatprep.subr.mxu0 0.0
        %877 = vmatpush1.msra.mxu0 %v798
        %878 = vmatprep.subr.mxu0 0.0
        %879 = vmatpush1.msra.mxu0 %v799
        %880 = vmatprep.subr.mxu0 0.0
        %881 = vmatpush1.msra.mxu0 %v800
        %882 = vmatprep.subr.mxu0 0.0
        %883 = vmatpush1.msra.mxu0 %v801
        %884 = vmatprep.subr.mxu0 0.0
        %885 = vmatpush1.msra.mxu0 0.0
        %886 = vmatprep.subr.mxu0 0.0
        %887 = vmatpush1.msra.mxu0 0.0
        %888 = vmatprep.subr.mxu0 0.0
        %889 = vmatpush1.msra.mxu0 0.0
        %890 = vmatprep.subr.mxu0 0.0
        %891 = vmatpush1.msra.mxu0 0.0
        %892 = vmatprep.subr.mxu0 0.0
        %893 = vmatpush1.msra.mxu0 0.0
        %894 = vmatprep.subr.mxu0 0.0
        %895 = vmatpush1.msra.mxu0 0.0
        %896 = vmatprep.subr.mxu0 0.0
        %897 = vmatpush1.msra.mxu0 0.0
        %898 = vmatprep.subr.mxu0 0.0
        %899 = vmatpush1.msra.mxu0 0.0
        %900 = vmatprep.subr.mxu0 0.0
        %901 = vmatpush1.msra.mxu0 0.0
        %902 = vmatprep.subr.mxu0 0.0
        %903 = vmatpush1.msra.mxu0 0.0
        %904 = vmatprep.subr.mxu0 0.0
        %905 = vmatpush1.msra.mxu0 0.0
        %906 = vmatprep.subr.mxu0 0.0
        %907 = vmatpush1.msra.mxu0 0.0
        %908 = vmatprep.subr.mxu0 0.0
        %909 = vmatpush1.msra.mxu0 0.0
        %910 = vmatprep.subr.mxu0 0.0
        %911 = vmatpush1.msra.mxu0 0.0
        %912 = vmatprep.subr.mxu0 0.0
        %913 = vmatpush1.msra.mxu0 0.0
        %914 = vmatprep.subr.mxu0 0.0
        %915 = vmatpush1.msra.mxu0 0.0
        %916 = vmatprep.subr.mxu0 0.0
        %917 = vmatpush1.msra.mxu0 0.0
        %918 = vmatprep.subr.mxu0 0.0
        %919 = vmatpush1.msra.mxu0 0.0
        %920 = vmatprep.subr.mxu0 0.0
        %921 = vmatpush1.msra.mxu0 0.0
        %922 = vmatprep.subr.mxu0 0.0
        %923 = vmatpush1.msra.mxu0 0.0
        %924 = vmatprep.subr.mxu0 0.0
        %925 = vmatpush1.msra.mxu0 0.0
        %926 = vmatprep.subr.mxu0 0.0
        %927 = vmatpush1.msra.mxu0 0.0
        %928 = vmatprep.subr.mxu0 0.0
        %929 = vmatpush1.msra.mxu0 0.0
        %930 = vmatprep.subr.mxu0 0.0
        %931 = vmatpush1.msra.mxu0 0.0
        %932 = vmatprep.subr.mxu0 0.0
        %933 = vmatpush1.msra.mxu0 0.0
        %934 = vmatprep.subr.mxu0 0.0
        %935 = vmatpush1.msra.mxu0 0.0
        %936 = vmatprep.subr.mxu0 0.0
        %937 = vmatpush1.msra.mxu0 0.0
        %938 = vmatprep.subr.mxu0 0.0
        %939 = vmatpush1.msra.mxu0 0.0
        %940 = vmatprep.mubr.f32.mxu0 0.0
        %941 = vmatmul.mubr.f32.gmra.mrb[0].mxu0 %v555
        %v942 = vpop.f32.mrb[0].mxu0
        %v943 = vadd.f32 %v873, %v942
        %v944 = vpop.f32.mrb[0].mxu0
        %945 = vdwg.mxu0
        %v946 = vld [vmem:[%s9] sm:$0x1]
        %v948 = vlaneseq
        %v949 = vshrl.u32 %v948, 7
        %v950 = vsub.s32 0, %v949
        %v951 = vrot.slane %v946, %v950
        %v953 = vadd.f32 %v943, %v951
        %955 = vset.pattern.permute.xlu0 0
        %956 = vperm.xlu0 %955, %v797
        %v957 = vpop.permute.xlu0 %956
        %v959 = vmul.f32 %v957, %v953
        %s960 = scalar_lea.vmem %s7, 32
        %v961 = vld [vmem:[%s960] sm:$0xff]
        %v962 = vld [vmem:[%s960 + $0x8] sm:$0xff]
        %v963 = vld [vmem:[%s960 + $0x10] sm:$0xff]
        %v964 = vld [vmem:[%s960 + $0x18] sm:$0xff]
        %s965 = scalar_lea.vmem %s8, 32
        %v966 = vld [vmem:[%s965] sm:$0xff]
        %v967 = vld [vmem:[%s965 + $0x8] sm:$0xff]
        %v968 = vld [vmem:[%s965 + $0x10] sm:$0xff]
        %v969 = vld [vmem:[%s965 + $0x18] sm:$0xff]
        %970 = vmatprep.subr.mxu0 0.0
        %971 = vmatpush1.msra.mxu0 %v966
        %972 = vmatprep.subr.mxu0 0.0
        %973 = vmatpush1.msra.mxu0 %v967
        %974 = vmatprep.subr.mxu0 0.0
        %975 = vmatpush1.msra.mxu0 %v968
        %976 = vmatprep.subr.mxu0 0.0
        %977 = vmatpush1.msra.mxu0 %v969
        %978 = vmatprep.subr.mxu0 0.0
        %979 = vmatpush1.msra.mxu0 0.0
        %980 = vmatprep.subr.mxu0 0.0
        %981 = vmatpush1.msra.mxu0 0.0
        %982 = vmatprep.subr.mxu0 0.0
        %983 = vmatpush1.msra.mxu0 0.0
        %984 = vmatprep.subr.mxu0 0.0
        %985 = vmatpush1.msra.mxu0 0.0
        %986 = vmatprep.subr.mxu0 0.0
        %987 = vmatpush1.msra.mxu0 0.0
        %988 = vmatprep.subr.mxu0 0.0
        %989 = vmatpush1.msra.mxu0 0.0
        %990 = vmatprep.subr.mxu0 0.0
        %991 = vmatpush1.msra.mxu0 0.0
        %992 = vmatprep.subr.mxu0 0.0
        %993 = vmatpush1.msra.mxu0 0.0
        %994 = vmatprep.subr.mxu0 0.0
        %995 = vmatpush1.msra.mxu0 0.0
        %996 = vmatprep.subr.mxu0 0.0
        %997 = vmatpush1.msra.mxu0 0.0
        %998 = vmatprep.subr.mxu0 0.0
        %999 = vmatpush1.msra.mxu0 0.0
        %1000 = vmatprep.subr.mxu0 0.0
        %1001 = vmatpush1.msra.mxu0 0.0
        %1002 = vmatprep.subr.mxu0 0.0
        %1003 = vmatpush1.msra.mxu0 0.0
        %1004 = vmatprep.subr.mxu0 0.0
        %1005 = vmatpush1.msra.mxu0 0.0
        %1006 = vmatprep.subr.mxu0 0.0
        %1007 = vmatpush1.msra.mxu0 0.0
        %1008 = vmatprep.subr.mxu0 0.0
        %1009 = vmatpush1.msra.mxu0 0.0
        %1010 = vmatprep.subr.mxu0 0.0
        %1011 = vmatpush1.msra.mxu0 0.0
        %1012 = vmatprep.subr.mxu0 0.0
        %1013 = vmatpush1.msra.mxu0 0.0
        %1014 = vmatprep.subr.mxu0 0.0
        %1015 = vmatpush1.msra.mxu0 0.0
        %1016 = vmatprep.subr.mxu0 0.0
        %1017 = vmatpush1.msra.mxu0 0.0
        %1018 = vmatprep.subr.mxu0 0.0
        %1019 = vmatpush1.msra.mxu0 0.0
        %1020 = vmatprep.subr.mxu0 0.0
        %1021 = vmatpush1.msra.mxu0 0.0
        %1022 = vmatprep.subr.mxu0 0.0
        %1023 = vmatpush1.msra.mxu0 0.0
        %1024 = vmatprep.subr.mxu0 0.0
        %1025 = vmatpush1.msra.mxu0 0.0
        %1026 = vmatprep.subr.mxu0 0.0
        %1027 = vmatpush1.msra.mxu0 0.0
        %1028 = vmatprep.subr.mxu0 0.0
        %1029 = vmatpush1.msra.mxu0 0.0
        %1030 = vmatprep.subr.mxu0 0.0
        %1031 = vmatpush1.msra.mxu0 0.0
        %1032 = vmatprep.subr.mxu0 0.0
        %1033 = vmatpush1.msra.mxu0 0.0
        %1034 = vmatprep.mubr.f32.mxu0 0.0
        %1035 = vmatmul.mubr.f32.gmra.mrb[0].mxu0 %v628
        %v1036 = vpop.f32.mrb[0].mxu0
        %v1037 = vadd.f32 0.0, %v1036
        %v1038 = vpop.f32.mrb[0].mxu0
        %1039 = vdwg.mxu0
        %1040 = vmatprep.subr.mxu0 0.0
        %1041 = vmatpush1.msra.mxu0 %v961
        %1042 = vmatprep.subr.mxu0 0.0
        %1043 = vmatpush1.msra.mxu0 %v962
        %1044 = vmatprep.subr.mxu0 0.0
        %1045 = vmatpush1.msra.mxu0 %v963
        %1046 = vmatprep.subr.mxu0 0.0
        %1047 = vmatpush1.msra.mxu0 %v964
        %1048 = vmatprep.subr.mxu0 0.0
        %1049 = vmatpush1.msra.mxu0 0.0
        %1050 = vmatprep.subr.mxu0 0.0
        %1051 = vmatpush1.msra.mxu0 0.0
        %1052 = vmatprep.subr.mxu0 0.0
        %1053 = vmatpush1.msra.mxu0 0.0
        %1054 = vmatprep.subr.mxu0 0.0
        %1055 = vmatpush1.msra.mxu0 0.0
        %1056 = vmatprep.subr.mxu0 0.0
        %1057 = vmatpush1.msra.mxu0 0.0
        %1058 = vmatprep.subr.mxu0 0.0
        %1059 = vmatpush1.msra.mxu0 0.0
        %1060 = vmatprep.subr.mxu0 0.0
        %1061 = vmatpush1.msra.mxu0 0.0
        %1062 = vmatprep.subr.mxu0 0.0
        %1063 = vmatpush1.msra.mxu0 0.0
        %1064 = vmatprep.subr.mxu0 0.0
        %1065 = vmatpush1.msra.mxu0 0.0
        %1066 = vmatprep.subr.mxu0 0.0
        %1067 = vmatpush1.msra.mxu0 0.0
        %1068 = vmatprep.subr.mxu0 0.0
        %1069 = vmatpush1.msra.mxu0 0.0
        %1070 = vmatprep.subr.mxu0 0.0
        %1071 = vmatpush1.msra.mxu0 0.0
        %1072 = vmatprep.subr.mxu0 0.0
        %1073 = vmatpush1.msra.mxu0 0.0
        %1074 = vmatprep.subr.mxu0 0.0
        %1075 = vmatpush1.msra.mxu0 0.0
        %1076 = vmatprep.subr.mxu0 0.0
        %1077 = vmatpush1.msra.mxu0 0.0
        %1078 = vmatprep.subr.mxu0 0.0
        %1079 = vmatpush1.msra.mxu0 0.0
        %1080 = vmatprep.subr.mxu0 0.0
        %1081 = vmatpush1.msra.mxu0 0.0
        %1082 = vmatprep.subr.mxu0 0.0
        %1083 = vmatpush1.msra.mxu0 0.0
        %1084 = vmatprep.subr.mxu0 0.0
        %1085 = vmatpush1.msra.mxu0 0.0
        %1086 = vmatprep.subr.mxu0 0.0
        %1087 = vmatpush1.msra.mxu0 0.0
        %1088 = vmatprep.subr.mxu0 0.0
        %1089 = vmatpush1.msra.mxu0 0.0
        %1090 = vmatprep.subr.mxu0 0.0
        %1091 = vmatpush1.msra.mxu0 0.0
        %1092 = vmatprep.subr.mxu0 0.0
        %1093 = vmatpush1.msra.mxu0 0.0
        %1094 = vmatprep.subr.mxu0 0.0
        %1095 = vmatpush1.msra.mxu0 0.0
        %1096 = vmatprep.subr.mxu0 0.0
        %1097 = vmatpush1.msra.mxu0 0.0
        %1098 = vmatprep.subr.mxu0 0.0
        %1099 = vmatpush1.msra.mxu0 0.0
        %1100 = vmatprep.subr.mxu0 0.0
        %1101 = vmatpush1.msra.mxu0 0.0
        %1102 = vmatprep.subr.mxu0 0.0
        %1103 = vmatpush1.msra.mxu0 0.0
        %1104 = vmatprep.mubr.f32.mxu0 0.0
        %1105 = vmatmul.mubr.f32.gmra.mrb[0].mxu0 %v555
        %v1106 = vpop.f32.mrb[0].mxu0
        %v1107 = vadd.f32 %v1037, %v1106
        %v1108 = vpop.f32.mrb[0].mxu0
        %1109 = vdwg.mxu0
        %s1110 = scalar_lea.vmem %s9, 1
        %v1111 = vld [vmem:[%s1110] sm:$0x1]
        %v1113 = vlaneseq
        %v1114 = vshrl.u32 %v1113, 7
        %v1115 = vsub.s32 0, %v1114
        %v1116 = vrot.slane %v1111, %v1115
        %v1118 = vadd.f32 %v1107, %v1116
        %1119 = vset.pattern.permute.xlu0 1
        %1120 = vperm.xlu0 %1119, %v797
        %v1121 = vpop.permute.xlu0 %1120
        %v1123 = vmul.f32 %v1121, %v1118
        %v1124 = vadd.f32 %v959, %v1123
        %v1125 = vsub.f32 0.0, %v1124
        %v1126 = vmul.f32 %v1125, 1.442695
        %v1127 = vpow.pop %v1126
        %v1128 = vadd.f32 %v1127, 1.0
        %v1129 = vrcp.pop %v1128
        %v1130 = vmul.f32 1.0, %v1129
        %v1131 = vtanh.pop %v1124
        %1132 = vrot.lane.b32.xlu0 %v544, 32
        %v1133 = vpop.permute.xlu0 %1132
        %v1135 = vmul.f32 %v1130, %v1133
        %1137 = vrot.lane.b32.xlu0 %v1131, 64
        %v1138 = vpop.permute.xlu0 %1137
        %v1140 = vmul.f32 %v1130, %v1138
        %1142 = vrot.lane.b32.xlu0 %v1140, 32
        %v1143 = vpop.permute.xlu0 %1142
        %v1145 = vadd.f32 %v1135, %v1143
        %v1146 = vtanh.pop %v1145
        %1148 = vrot.lane.b32.xlu0 %v1146, 64
        %v1149 = vpop.permute.xlu0 %1148
        %v1151 = vmul.f32 %v1130, %v1149
        %1153 = vrot.lane.b32.xlu0 %v1151, 32
        %v1154 = vpop.permute.xlu0 %1153
        %1156 = vst.msk [vmem:[#allocation2] sm:$0xff] %vm553, %v1154
        %1158 = vrot.lane.b32.xlu0 %v1145, 96
        %v1159 = vpop.permute.xlu0 %1158
        %1161 = vst.msk [vmem:[#allocation3] sm:$0xff] %vm553, %v1159
        %v1162 = vld [vmem:[%s10] sm:$0xff]
        %v1163 = vld [vmem:[%s10 + $0x8] sm:$0xff]
        %v1164 = vld [vmem:[%s10 + $0x10] sm:$0xff]
        %v1165 = vld [vmem:[%s10 + $0x18] sm:$0xff]
        %v1166 = vld [vmem:[%s11] sm:$0x1]
        %v1168 = vlaneseq
        %v1169 = vshrl.u32 %v1168, 7
        %v1170 = vsub.s32 0, %v1169
        %v1171 = vrot.slane %v1166, %v1170
        %v1173 = vsel %vm553, %v1154, 0
        %1175 = vmatprep.subr.mxu0 0.0
        %1176 = vmatpush1.msra.mxu0 %v1162
        %1177 = vmatprep.subr.mxu0 0.0
        %1178 = vmatpush1.msra.mxu0 %v1163
        %1179 = vmatprep.subr.mxu0 0.0
        %1180 = vmatpush1.msra.mxu0 %v1164
        %1181 = vmatprep.subr.mxu0 0.0
        %1182 = vmatpush1.msra.mxu0 %v1165
        %1183 = vmatprep.subr.mxu0 0.0
        %1184 = vmatpush1.msra.mxu0 0.0
        %1185 = vmatprep.subr.mxu0 0.0
        %1186 = vmatpush1.msra.mxu0 0.0
        %1187 = vmatprep.subr.mxu0 0.0
        %1188 = vmatpush1.msra.mxu0 0.0
        %1189 = vmatprep.subr.mxu0 0.0
        %1190 = vmatpush1.msra.mxu0 0.0
        %1191 = vmatprep.subr.mxu0 0.0
        %1192 = vmatpush1.msra.mxu0 0.0
        %1193 = vmatprep.subr.mxu0 0.0
        %1194 = vmatpush1.msra.mxu0 0.0
        %1195 = vmatprep.subr.mxu0 0.0
        %1196 = vmatpush1.msra.mxu0 0.0
        %1197 = vmatprep.subr.mxu0 0.0
        %1198 = vmatpush1.msra.mxu0 0.0
        %1199 = vmatprep.subr.mxu0 0.0
        %1200 = vmatpush1.msra.mxu0 0.0
        %1201 = vmatprep.subr.mxu0 0.0
        %1202 = vmatpush1.msra.mxu0 0.0
        %1203 = vmatprep.subr.mxu0 0.0
        %1204 = vmatpush1.msra.mxu0 0.0
        %1205 = vmatprep.subr.mxu0 0.0
        %1206 = vmatpush1.msra.mxu0 0.0
        %1207 = vmatprep.subr.mxu0 0.0
        %1208 = vmatpush1.msra.mxu0 0.0
        %1209 = vmatprep.subr.mxu0 0.0
        %1210 = vmatpush1.msra.mxu0 0.0
        %1211 = vmatprep.subr.mxu0 0.0
        %1212 = vmatpush1.msra.mxu0 0.0
        %1213 = vmatprep.subr.mxu0 0.0
        %1214 = vmatpush1.msra.mxu0 0.0
        %1215 = vmatprep.subr.mxu0 0.0
        %1216 = vmatpush1.msra.mxu0 0.0
        %1217 = vmatprep.subr.mxu0 0.0
        %1218 = vmatpush1.msra.mxu0 0.0
        %1219 = vmatprep.subr.mxu0 0.0
        %1220 = vmatpush1.msra.mxu0 0.0
        %1221 = vmatprep.subr.mxu0 0.0
        %1222 = vmatpush1.msra.mxu0 0.0
        %1223 = vmatprep.subr.mxu0 0.0
        %1224 = vmatpush1.msra.mxu0 0.0
        %1225 = vmatprep.subr.mxu0 0.0
        %1226 = vmatpush1.msra.mxu0 0.0
        %1227 = vmatprep.subr.mxu0 0.0
        %1228 = vmatpush1.msra.mxu0 0.0
        %1229 = vmatprep.subr.mxu0 0.0
        %1230 = vmatpush1.msra.mxu0 0.0
        %1231 = vmatprep.subr.mxu0 0.0
        %1232 = vmatpush1.msra.mxu0 0.0
        %1233 = vmatprep.subr.mxu0 0.0
        %1234 = vmatpush1.msra.mxu0 0.0
        %1235 = vmatprep.subr.mxu0 0.0
        %1236 = vmatpush1.msra.mxu0 0.0
        %1237 = vmatprep.subr.mxu0 0.0
        %1238 = vmatpush1.msra.mxu0 0.0
        %1239 = vmatprep.mubr.f32.mxu0 0.0
        %1240 = vmatmul.mubr.f32.gmra.mrb[0].mxu0 %v1173
        %v1241 = vpop.f32.mrb[0].mxu0
        %v1242 = vadd.f32 %v1171, %v1241
        %v1243 = vpop.f32.mrb[0].mxu0
        %1244 = vdwg.mxu0
        %v1245 = vmul.f32 %v957, %v1242
        %s1246 = scalar_lea.vmem %s10, 32
        %v1247 = vld [vmem:[%s1246] sm:$0xff]
        %v1248 = vld [vmem:[%s1246 + $0x8] sm:$0xff]
        %v1249 = vld [vmem:[%s1246 + $0x10] sm:$0xff]
        %v1250 = vld [vmem:[%s1246 + $0x18] sm:$0xff]
        %s1251 = scalar_lea.vmem %s11, 1
        %v1252 = vld [vmem:[%s1251] sm:$0x1]
        %v1254 = vlaneseq
        %v1255 = vshrl.u32 %v1254, 7
        %v1256 = vsub.s32 0, %v1255
        %v1257 = vrot.slane %v1252, %v1256
        %1259 = vmatprep.subr.mxu0 0.0
        %1260 = vmatpush1.msra.mxu0 %v1247
        %1261 = vmatprep.subr.mxu0 0.0
        %1262 = vmatpush1.msra.mxu0 %v1248
        %1263 = vmatprep.subr.mxu0 0.0
        %1264 = vmatpush1.msra.mxu0 %v1249
        %1265 = vmatprep.subr.mxu0 0.0
        %1266 = vmatpush1.msra.mxu0 %v1250
        %1267 = vmatprep.subr.mxu0 0.0
        %1268 = vmatpush1.msra.mxu0 0.0
        %1269 = vmatprep.subr.mxu0 0.0
        %1270 = vmatpush1.msra.mxu0 0.0
        %1271 = vmatprep.subr.mxu0 0.0
        %1272 = vmatpush1.msra.mxu0 0.0
        %1273 = vmatprep.subr.mxu0 0.0
        %1274 = vmatpush1.msra.mxu0 0.0
        %1275 = vmatprep.subr.mxu0 0.0
        %1276 = vmatpush1.msra.mxu0 0.0
        %1277 = vmatprep.subr.mxu0 0.0
        %1278 = vmatpush1.msra.mxu0 0.0
        %1279 = vmatprep.subr.mxu0 0.0
        %1280 = vmatpush1.msra.mxu0 0.0
        %1281 = vmatprep.subr.mxu0 0.0
        %1282 = vmatpush1.msra.mxu0 0.0
        %1283 = vmatprep.subr.mxu0 0.0
        %1284 = vmatpush1.msra.mxu0 0.0
        %1285 = vmatprep.subr.mxu0 0.0
        %1286 = vmatpush1.msra.mxu0 0.0
        %1287 = vmatprep.subr.mxu0 0.0
        %1288 = vmatpush1.msra.mxu0 0.0
        %1289 = vmatprep.subr.mxu0 0.0
        %1290 = vmatpush1.msra.mxu0 0.0
        %1291 = vmatprep.subr.mxu0 0.0
        %1292 = vmatpush1.msra.mxu0 0.0
        %1293 = vmatprep.subr.mxu0 0.0
        %1294 = vmatpush1.msra.mxu0 0.0
        %1295 = vmatprep.subr.mxu0 0.0
        %1296 = vmatpush1.msra.mxu0 0.0
        %1297 = vmatprep.subr.mxu0 0.0
        %1298 = vmatpush1.msra.mxu0 0.0
        %1299 = vmatprep.subr.mxu0 0.0
        %1300 = vmatpush1.msra.mxu0 0.0
        %1301 = vmatprep.subr.mxu0 0.0
        %1302 = vmatpush1.msra.mxu0 0.0
        %1303 = vmatprep.subr.mxu0 0.0
        %1304 = vmatpush1.msra.mxu0 0.0
        %1305 = vmatprep.subr.mxu0 0.0
        %1306 = vmatpush1.msra.mxu0 0.0
        %1307 = vmatprep.subr.mxu0 0.0
        %1308 = vmatpush1.msra.mxu0 0.0
        %1309 = vmatprep.subr.mxu0 0.0
        %1310 = vmatpush1.msra.mxu0 0.0
        %1311 = vmatprep.subr.mxu0 0.0
        %1312 = vmatpush1.msra.mxu0 0.0
        %1313 = vmatprep.subr.mxu0 0.0
        %1314 = vmatpush1.msra.mxu0 0.0
        %1315 = vmatprep.subr.mxu0 0.0
        %1316 = vmatpush1.msra.mxu0 0.0
        %1317 = vmatprep.subr.mxu0 0.0
        %1318 = vmatpush1.msra.mxu0 0.0
        %1319 = vmatprep.subr.mxu0 0.0
        %1320 = vmatpush1.msra.mxu0 0.0
        %1321 = vmatprep.subr.mxu0 0.0
        %1322 = vmatpush1.msra.mxu0 0.0
        %1323 = vmatprep.mubr.f32.mxu0 0.0
        %1324 = vmatmul.mubr.f32.gmra.mrb[0].mxu0 %v1173
        %v1325 = vpop.f32.mrb[0].mxu0
        %v1326 = vadd.f32 %v1257, %v1325
        %v1327 = vpop.f32.mrb[0].mxu0
        %1328 = vdwg.mxu0
        %v1329 = vmul.f32 %v1121, %v1326
        %v1330 = vadd.f32 %v1245, %v1329
        %1331 = vst [vmem:[%s506] sm:$0xff] %v1330
        %p1332 = scmp.eq.s32.totalorder %s30, 3
        // Predicated region
        $region73: #{tpu_custom_call.1} parent=67 // pred_check
          %p1333 = pneg %p1332
        $region74: #{tpu_custom_call.1} parent=67 // pred_check_branch
          %1335 = sbr.rel (%p1333) target = $region76
        $region75: #{tpu_custom_call.1} parent=67 // pred_region
          %1336 = vst.msk [vmem:[#allocation6] sm:$0xff] %vm553, %v1154
          %1337 = vst.msk [vmem:[#allocation8] sm:$0xff] %vm553, %v1159
        $region76: #{tpu_custom_call.1} parent=67 // pred_fallthru
          _
        %s1338 = sand.u32 %s315, 1
        %s1339 = scalar_lea.sflag [#allocation5], %s1338
        %s1340 = sand.u32 %s315, 1
        %s1341 = smul.addr %s1340, 8
        %s1342 = scalar_lea.vmem [#allocation4], %s1341
        // Predicated region
        $region77: #{tpu_custom_call.1} parent=67 // pred_check
          %p1343 = pneg %p325
        $region78: #{tpu_custom_call.1} parent=67 // pred_check_branch
          %1345 = sbr.rel (%p1343) target = $region80
        $region79: #{tpu_custom_call.1} parent=67 // pred_region
          %s1347 = ssub.s32 128, 128
          %1348 = vsyncadd %s1339, %s1347
          %s1349 = smul.addr %s30, 128
          %s1350 = scalar_lea.hbm %s12, %s1349
          %s1352 = sshll.u32 %s1342, 4
          %s1353 = int_to_ptr.vmem [resolvable:$true] %s1352
          %1355 = dma.vmem_to_hbm [thread:$0]  %s1353, 128, %s1350, %s1339
        $region80: #{tpu_custom_call.1} parent=67 // pred_fallthru
          _
        // Predicated region
        $region81: #{tpu_custom_call.1} parent=67 // pred_check
          %p1356 = pneg %p346
        $region82: #{tpu_custom_call.1} parent=67 // pred_check_branch
          %1358 = sbr.rel (%p1356) target = $region84
        $region83: #{tpu_custom_call.1} parent=67 // pred_region
          %s1360 = ssub.s32 128, 128
          %1361 = vsyncadd [#allocation7], %s1360
          %s1363 = sshll.u32 [#allocation6], 4
          %s1364 = int_to_ptr.vmem [resolvable:$true] %s1363
          %1366 = dma.vmem_to_hbm [thread:$0]  %s1364, 128, %s13, [#allocation7]
        $region84: #{tpu_custom_call.1} parent=67 // pred_fallthru
          _
        // Predicated region
        $region85: #{tpu_custom_call.1} parent=67 // pred_check
          %p1367 = pneg %p367
        $region86: #{tpu_custom_call.1} parent=67 // pred_check_branch
          %1369 = sbr.rel (%p1367) target = $region88
        $region87: #{tpu_custom_call.1} parent=67 // pred_region
          %s1371 = ssub.s32 128, 128
          %1372 = vsyncadd [#allocation7], %s1371
          %s1374 = sshll.u32 [#allocation8], 4
          %s1375 = int_to_ptr.vmem [resolvable:$true] %s1374
          %1377 = dma.vmem_to_hbm [thread:$0]  %s1375, 128, %s14, [#allocation7]
        $region88: #{tpu_custom_call.1} parent=67 // pred_fallthru
          _
        // Predicated region
        $region89: #{tpu_custom_call.1} parent=67 // pred_check
          %p1378 = pneg %p346
        $region90: #{tpu_custom_call.1} parent=67 // pred_check_branch
          %1380 = sbr.rel (%p1378) target = $region92
        $region91: #{tpu_custom_call.1} parent=67 // pred_region
          %1381 = dma.done [#allocation7], 128
        $region92: #{tpu_custom_call.1} parent=67 // pred_fallthru
          _
        // Predicated region
        $region93: #{tpu_custom_call.1} parent=67 // pred_check
          %p1382 = pneg %p367
        $region94: #{tpu_custom_call.1} parent=67 // pred_check_branch
          %1384 = sbr.rel (%p1382) target = $region96
        $region95: #{tpu_custom_call.1} parent=67 // pred_region
          %1385 = dma.done [#allocation7], 128
        $region96: #{tpu_custom_call.1} parent=67 // pred_fallthru
          _
      $region68: #{tpu_custom_call.1} parent=5 // pred_fallthru
        _
      %p1386 = scmp.le.s32.totalorder 2, %s25
      // Predicated region
      $region97: #{tpu_custom_call.1} parent=5 // pred_check
        %p1387 = pneg %p1386
      $region98: #{tpu_custom_call.1} parent=5 // pred_check_branch
        %1389 = sbr.rel (%p1387) target = $region100
      $region99: #{tpu_custom_call.1} parent=5 // pred_region
        %s1390 = ssub.s32 %s25, 2
        // Predicated region
        $region101: #{tpu_custom_call.1} parent=99 // pred_check
          %p1391 = pneg %p331
        $region102: #{tpu_custom_call.1} parent=99 // pred_check_branch
          %1393 = sbr.rel (%p1391) target = $region104
        $region103: #{tpu_custom_call.1} parent=99 // pred_region
          %s1394 = sand.u32 %s316, 1
          %s1395 = scalar_lea.sflag [#allocation5], %s1394
          %s1396 = sand.u32 %s316, 1
          %s1397 = smul.addr %s1396, 8
          %s1398 = scalar_lea.vmem [#allocation4], %s1397
          %1399 = dma.done %s1395, 128
        $region104: #{tpu_custom_call.1} parent=99 // pred_fallthru
          _
      $region100: #{tpu_custom_call.1} parent=5 // pred_fallthru
        _
    $region6: #{tpu_custom_call.1} parent=1 // loop_footer
      %s29 = sadd.s32 1, %s25
    $region7: #{tpu_custom_call.1} parent=1 // loop_footer_branch
      %24 = sbr.rel target = $region3
    $region8: #{tpu_custom_call.1} parent=1 // loop_exit
      _
    %1400 = vsyncpa [#allocation5], 1
    %s1401 = scalar_lea.sflag [#allocation5], 1
    %1402 = vsyncpa %s1401, 1
    %1403 = vsyncpa [#allocation7], 1

</llo_original>
